<compile_context>
chip_gen: v6e
topology: v6e:2x2x1
jax: 0.10.0
libtpu: 0.0.40
codegen_flags: <defaults>
</compile_context>

<pallas_src>
import functools

import jax
import jax.numpy as jnp
from jax.experimental import pallas as pl
from jax.experimental.pallas import tpu as pltpu  # noqa: F401  (not needed at these sizes)


# ----------------------------- fused encoder kernel -----------------------------

def _encoder_kernel(emb_ref, mask_ref, hsel_ref, eg_ref, eb_ref, iw_ref, ib_ref,
                    wqkv_ref, bqkv_ref, wo_ref, bo_ref,
                    w1_ref, b1_ref, w2_ref, b2_ref, lng_ref, lnb_ref,
                    o_ref, *, batch, seq, n_layer, n_head):
    f32, bf16 = jnp.float32, jnp.bfloat16
    T = seq

    def layernorm(x, g, b):
        mu = jnp.mean(x, axis=-1, keepdims=True)
        var = jnp.mean(jnp.square(x - mu), axis=-1, keepdims=True)
        return (x - mu) * jax.lax.rsqrt(var + 1e-5) * g + b

    # ---- embedding LayerNorm (token + positional already summed by the wrapper glue)
    x = layernorm(emb_ref[...], eg_ref[...], eb_ref[...])                  # (B*T, d_model) f32

    # ---- input projection d_model -> D, all B*T rows in one MXU push
    x = jnp.dot(x.astype(bf16), iw_ref[...],
                preferred_element_type=f32) + ib_ref[...]                  # (B*T, D) f32

    sqrt_half = f32(0.7071067811865476)

    for l in range(n_layer):                                               # static unroll over layers
        xb = x.astype(bf16)

        # ---- per-layer Q/K/V over ALL B*T rows with full-width lane-dense weights
        #      (1/sqrt(d_head) is folded into Wq/bq at pack time)
        q_all = jnp.dot(xb, wqkv_ref[l, 0], preferred_element_type=f32) + bqkv_ref[l, 0]
        k_all = jnp.dot(xb, wqkv_ref[l, 1], preferred_element_type=f32) + bqkv_ref[l, 1]
        v_all = jnp.dot(xb, wqkv_ref[l, 2], preferred_element_type=f32) + bqkv_ref[l, 2]

        # ---- per-example attention.  Per-head operands are built with 0/1
        #      head-selector lane masks (VPU) instead of 16-wide lane slices:
        #      every MXU operand stays full D-width and the heads reassemble by
        #      summation, so no cross-lane slice/concat relayouts are needed.
        ctx_rows = []
        for b in range(batch):                       # static unroll; attention is per example
            lo, hi = b * T, (b + 1) * T              # sublane-aligned row slice
            qb, kb, vb = q_all[lo:hi], k_all[lo:hi], v_all[lo:hi]
            kb_b = kb.astype(bf16)
            m = mask_ref[b]                          # (1, T) additive key mask
            ctx_b = None
            for h in range(n_head):                  # static unroll over heads
                sel = hsel_ref[h]                    # (1, D) 0/1 selector for head h lanes
                # selector restricts the contraction to head-h lanes
                s = jax.lax.dot_general((qb * sel).astype(bf16), kb_b,
                                        (((1,), (1,)), ((), ())),
                                        preferred_element_type=f32)        # (T, T)
                s = s + m
                s = s - jnp.max(s, axis=-1, keepdims=True)
                p = jnp.exp(s)
                p = p * pl.reciprocal(jnp.sum(p, axis=-1, keepdims=True), approx=True)
                # head-h context lands only in head-h lanes; other lanes are zero,
                # so summing over heads reassembles the concatenated context.
                part = jnp.dot(p.astype(bf16), (vb * sel).astype(bf16),
                               preferred_element_type=f32)                  # (T, D)
                ctx_b = part if ctx_b is None else ctx_b + part
            ctx_rows.append(ctx_b)
        ctx = ctx_rows[0] if batch == 1 else jnp.concatenate(ctx_rows, axis=0)  # (B*T, D)

        # ---- single output projection for all heads / rows
        attn = jnp.dot(ctx.astype(bf16), wo_ref[l],
                       preferred_element_type=f32) + bo_ref[l]

        # ---- FFN with exact-erf GELU (matches nn.GELU() default)
        # TODO(synk): tanh GELU would run on the otherwise-idle EUP slot if the
        # accuracy budget allows.
        hmid = jnp.dot(attn.astype(bf16), w1_ref[l],
                       preferred_element_type=f32) + b1_ref[l]
        hmid = 0.5 * hmid * (1.0 + jax.lax.erf(hmid * sqrt_half))
        hout = jnp.dot(hmid.astype(bf16), w2_ref[l],
                       preferred_element_type=f32) + b2_ref[l]

        # ---- residual to the LAYER INPUT (as in EncoderLayer.forward) + LayerNorm
        x = layernorm(x + hout, lng_ref[l], lnb_ref[l])

    # TODO(synk): D=32 < 128 lanes -> masked stores at this toy size; at real
    # sizes emit a lane-dense (optionally bf16) slab instead.
    o_ref[...] = x.astype(o_ref.dtype)


# ----------------------------- one-time weight packing -----------------------------

def pack_params(params, cfg):
    """Host-side, one-time packing of Encoder weights into the kernel layout
    (bf16 matmul weights, lane-dense last dims, QK scale folded into Wq/bq)."""
    H, dh = cfg["n_head"], cfg["d_head"]
    D = H * dh
    dm = cfg["d_model"]
    bf16 = jnp.bfloat16
    inv_scale = 1.0 / float(dh) ** 0.5       # == d_head**-0.25 applied to q AND k

    def stack(fn):
        return jnp.stack([fn(lp) for lp in params["layers"]])

    wqkv = stack(lambda lp: jnp.stack([lp["attn"]["wq"] * inv_scale,
                                       lp["attn"]["wk"],
                                       lp["attn"]["wv"]])).astype(bf16)        # (L,3,D,D)
    bqkv = stack(lambda lp: jnp.stack([lp["attn"]["bq"] * inv_scale,
                                       lp["attn"]["bk"],
                                       lp["attn"]["bv"]]).reshape(3, 1, D))    # (L,3,1,D) f32
    wo = stack(lambda lp: lp["attn"]["wo"]).astype(bf16)                       # (L,D,D)
    bo = stack(lambda lp: lp["attn"]["bo"].reshape(1, D))                      # (L,1,D)
    w1 = stack(lambda lp: lp["ffn_w1"]).astype(bf16)                           # (L,D,dff)
    b1 = stack(lambda lp: lp["ffn_b1"].reshape(1, -1))                         # (L,1,dff)
    w2 = stack(lambda lp: lp["ffn_w2"]).astype(bf16)                           # (L,dff,D)
    b2 = stack(lambda lp: lp["ffn_b2"].reshape(1, D))                          # (L,1,D)
    lng = stack(lambda lp: lp["out_ln_g"].reshape(1, D))
    lnb = stack(lambda lp: lp["out_ln_b"].reshape(1, D))

    # 0/1 head-selector rows: head h occupies lanes [h*dh, (h+1)*dh)
    lane = jnp.arange(D)
    hsel = jnp.stack([((lane >= h * dh) & (lane < (h + 1) * dh)).astype(jnp.float32)
                      for h in range(H)]).reshape(H, 1, D)

    return dict(
        token_emb=params["token_emb"],
        pos_emb=params["pos_emb"],
        eg=params["embed_g"].reshape(1, dm),
        eb=params["embed_b"].reshape(1, dm),
        iw=params["inter_w"].astype(bf16),
        ib=params["inter_b"].reshape(1, D),
        wqkv=wqkv, bqkv=bqkv, wo=wo, bo=bo,
        w1=w1, b1=b1, w2=w2, b2=b2, lng=lng, lnb=lnb,
        hsel=hsel,
    )


# ----------------------------- pallas_call wrapper -----------------------------

def encoder_forward(packed, token_ids, add_mask, cfg):
    B, T = token_ids.shape
    dm = cfg["d_model"]
    D = cfg["n_head"] * cfg["d_head"]

    # Glue: embedding gather + positional add (tiny); everything else is in-kernel.
    emb = (jnp.take(packed["token_emb"], token_ids, axis=0)
           + packed["pos_emb"][:T][None]).reshape(B * T, dm).astype(jnp.float32)
    mask3 = add_mask.reshape(B, 1, T).astype(jnp.float32)        # additive key mask

    kernel = functools.partial(_encoder_kernel, batch=B, seq=T,
                               n_layer=cfg["n_layer"], n_head=cfg["n_head"])

    # Single kernel invocation (no grid): all B*T rows processed together so the
    # shared matmuls use full sublane tiles; all weights + activations fit VMEM
    # at these sizes, so whole-array blocks (default specs) are used.
    out = pl.pallas_call(
        kernel,
        out_shape=jax.ShapeDtypeStruct((B * T, D), jnp.float32),
    )(emb, mask3, packed["hsel"], packed["eg"], packed["eb"],
      packed["iw"], packed["ib"], packed["wqkv"], packed["bqkv"],
      packed["wo"], packed["bo"], packed["w1"], packed["b1"],
      packed["w2"], packed["b2"], packed["lng"], packed["lnb"])
    return out.reshape(B, T, D)


# ----------------------------- pure-JAX reference -----------------------------
# Mirrors the kernel's precision policy (bf16 matmul operands, f32 accumulation)
# but keeps the canonical PyTorch structure (full projections, head reshape/
# transpose, concat, single output projection, exact softmax).

def _mm(a, w):
    return jnp.dot(a.astype(jnp.bfloat16), w.astype(jnp.bfloat16),
                   preferred_element_type=jnp.float32)


def _gelu_exact(x):
    return 0.5 * x * (1.0 + jax.lax.erf(x * jnp.float32(0.7071067811865476)))


def _ref_layernorm(x, g, b):
    mu = jnp.mean(x, axis=-1, keepdims=True)
    var = jnp.mean((x - mu) ** 2, axis=-1, keepdims=True)
    return (x - mu) * jax.lax.rsqrt(var + 1e-5) * g + b


def _ref_mha(x, add_mask, p, n_head, d_head):
    B, T, D = x.shape
    scale = d_head ** 0.25
    bf = jnp.bfloat16

    def proj(w, b):
        return (_mm(x, w) + b).reshape(B, T, n_head, d_head).transpose(0, 2, 1, 3)

    q = proj(p["wq"], p["bq"]) / scale
    k = proj(p["wk"], p["bk"]) / scale
    v = proj(p["wv"], p["bv"])
    scores = jnp.einsum("bhqd,bhkd->bhqk", q.astype(bf), k.astype(bf),
                        preferred_element_type=jnp.float32)
    scores = scores + add_mask[:, None, None, :]
    probs = jax.nn.softmax(scores, axis=-1)
    ctx = jnp.einsum("bhqk,bhkd->bhqd", probs.astype(bf), v.astype(bf),
                     preferred_element_type=jnp.float32)
    ctx = ctx.transpose(0, 2, 1, 3).reshape(B, T, D)
    return _mm(ctx, p["wo"]) + p["bo"]


def ref_encoder(params, token_ids, add_mask, cfg):
    tok = params["token_emb"][token_ids]
    T = token_ids.shape[1]
    pos = params["pos_emb"][:T]
    x = _ref_layernorm(tok + pos[None], params["embed_g"], params["embed_b"])
    x = _mm(x, params["inter_w"]) + params["inter_b"]
    for lp in params["layers"]:
        h = _ref_mha(x, add_mask, lp["attn"], cfg["n_head"], cfg["d_head"])
        h = _mm(_gelu_exact(_mm(h, lp["ffn_w1"]) + lp["ffn_b1"]), lp["ffn_w2"]) + lp["ffn_b2"]
        x = _ref_layernorm(x + h, lp["out_ln_g"], lp["out_ln_b"])
    return x


# ----------------------------- parameters -----------------------------

def init_params(key, cfg):
    d_model = cfg["d_model"]
    d = cfg["n_head"] * cfg["d_head"]
    d_ff = cfg["d_ff"]
    keys = iter(jax.random.split(key, 64))

    def dense(din, dout):
        # stored pre-transposed: y = x @ W + b  (== PyTorch x @ weight.T + bias)
        w = jax.random.normal(next(keys), (din, dout), jnp.float32) * 0.05
        b = jax.random.normal(next(keys), (dout,), jnp.float32) * 0.05
        return w, b

    params = {
        "token_emb": jax.random.normal(next(keys), (cfg["n_enc_vocab"], d_model), jnp.float32) * 0.05,
        "pos_emb": jax.random.normal(next(keys), (cfg["n_enc_seq"] + 1, d_model), jnp.float32) * 0.05,
        "embed_g": jnp.ones((d_model,), jnp.float32),
        "embed_b": jnp.zeros((d_model,), jnp.float32),
    }
    params["inter_w"], params["inter_b"] = dense(d_model, d)

    layers = []
    for _ in range(cfg["n_layer"]):
        wq, bq = dense(d, d)
        wk, bk = dense(d, d)
        wv, bv = dense(d, d)
        wo, bo = dense(d, d)
        w1, b1 = dense(d, d_ff)
        w2, b2 = dense(d_ff, d)
        layers.append(dict(
            attn=dict(wq=wq, bq=bq, wk=wk, bk=bk, wv=wv, bv=bv, wo=wo, bo=bo),
            ffn_w1=w1, ffn_b1=b1, ffn_w2=w2, ffn_b2=b2,
            out_ln_g=jnp.ones((d,), jnp.float32),
            out_ln_b=jnp.zeros((d,), jnp.float32),
        ))
    params["layers"] = layers
    return params


# ----------------------------- main -----------------------------

if __name__ == "__main__":
    cfg = dict(n_enc_vocab=50, n_enc_seq=16, d_model=32, n_head=2, d_head=16,
               d_ff=64, n_layer=2, i_pad=0, dropout=0.1)
    B, T = 2, 8

    key = jax.random.PRNGKey(0)
    pkey, ikey = jax.random.split(key)
    params = init_params(pkey, cfg)
    packed = pack_params(params, cfg)     # one-time packing, hoisted out of the forward path

    token_ids = jax.random.randint(ikey, (B, T), 1, cfg["n_enc_vocab"])
    token_ids = token_ids.at[:, -2:].set(cfg["i_pad"])            # a couple of pad tokens
    # additive attention mask, as expected by `scores = scores + mask[:,None,None,:]`
    add_mask = jnp.where(token_ids == cfg["i_pad"], -1e9, 0.0).astype(jnp.float32)

    out = encoder_forward(packed, token_ids, add_mask, cfg)
    out = jax.block_until_ready(out)

    ref = ref_encoder(params, token_ids, add_mask, cfg)
    assert out.shape == (B, T, cfg["n_head"] * cfg["d_head"])
    err = float(jnp.max(jnp.abs(out - ref)))
    # tolerance covers bf16-operand matmuls + approx EUP reciprocal in softmax
    if err > 2e-2:
        raise AssertionError(f"Pallas output mismatch vs reference, max abs err = {err}")

    print("KERNEL_OK")
</pallas_src>

<mosaic_0001>
module attributes {stable_mosaic.version = 11 : i64} {
  func.func @_encoder_kernel(%arg0: memref<16x32xf32, #tpu.memory_space<vmem>>, %arg1: memref<2x1x8xf32, #tpu.memory_space<vmem>>, %arg2: memref<2x1x32xf32, #tpu.memory_space<vmem>>, %arg3: memref<1x32xf32, #tpu.memory_space<vmem>>, %arg4: memref<1x32xf32, #tpu.memory_space<vmem>>, %arg5: memref<32x32xbf16, #tpu.memory_space<vmem>>, %arg6: memref<1x32xf32, #tpu.memory_space<vmem>>, %arg7: memref<2x3x32x32xbf16, #tpu.memory_space<vmem>>, %arg8: memref<2x3x1x32xf32, #tpu.memory_space<vmem>>, %arg9: memref<2x32x32xbf16, #tpu.memory_space<vmem>>, %arg10: memref<2x1x32xf32, #tpu.memory_space<vmem>>, %arg11: memref<2x32x64xbf16, #tpu.memory_space<vmem>>, %arg12: memref<2x1x64xf32, #tpu.memory_space<vmem>>, %arg13: memref<2x64x32xbf16, #tpu.memory_space<vmem>>, %arg14: memref<2x1x32xf32, #tpu.memory_space<vmem>>, %arg15: memref<2x1x32xf32, #tpu.memory_space<vmem>>, %arg16: memref<2x1x32xf32, #tpu.memory_space<vmem>>, %arg17: memref<16x32xf32, #tpu.memory_space<vmem>>) attributes {dimension_semantics = [], scalar_prefetch = 0 : i64, scratch_operands = 0 : i64, tpu.core_type = #tpu.core_type<tc>} {
    %c0 = arith.constant 0 : index
    %c0_0 = arith.constant 0 : index
    %0 = vector.load %arg0[%c0, %c0_0] : memref<16x32xf32, #tpu.memory_space<vmem>>, vector<16x32xf32>
    %c0_1 = arith.constant 0 : index
    %c0_2 = arith.constant 0 : index
    %1 = vector.load %arg3[%c0_1, %c0_2] : memref<1x32xf32, #tpu.memory_space<vmem>>, vector<1x32xf32>
    %c0_3 = arith.constant 0 : index
    %c0_4 = arith.constant 0 : index
    %2 = vector.load %arg4[%c0_3, %c0_4] : memref<1x32xf32, #tpu.memory_space<vmem>>, vector<1x32xf32>
    %cst = arith.constant dense<0.000000e+00> : vector<16xf32>
    %3 = vector.multi_reduction <add>, %0, %cst [1] : vector<16x32xf32> to vector<16xf32>
    %4 = vector.shape_cast %3 : vector<16xf32> to vector<16x1xf32>
    %cst_5 = arith.constant 3.200000e+01 : f32
    %5 = vector.broadcast %cst_5 : f32 to vector<16x1xf32>
    %6 = arith.divf %4, %5 : vector<16x1xf32>
    %7 = vector.broadcast %6 : vector<16x1xf32> to vector<16x32xf32>
    %8 = arith.subf %0, %7 : vector<16x32xf32>
    %9 = arith.mulf %8, %8 : vector<16x32xf32>
    %cst_6 = arith.constant dense<0.000000e+00> : vector<16xf32>
    %10 = vector.multi_reduction <add>, %9, %cst_6 [1] : vector<16x32xf32> to vector<16xf32>
    %11 = vector.shape_cast %10 : vector<16xf32> to vector<16x1xf32>
    %cst_7 = arith.constant 3.200000e+01 : f32
    %12 = vector.broadcast %cst_7 : f32 to vector<16x1xf32>
    %13 = arith.divf %11, %12 : vector<16x1xf32>
    %14 = vector.broadcast %6 : vector<16x1xf32> to vector<16x32xf32>
    %15 = arith.subf %0, %14 : vector<16x32xf32>
    %cst_8 = arith.constant 9.99999974E-6 : f32
    %16 = vector.broadcast %cst_8 : f32 to vector<16x1xf32>
    %17 = arith.addf %13, %16 : vector<16x1xf32>
    %18 = math.rsqrt %17 : vector<16x1xf32>
    %19 = vector.broadcast %18 : vector<16x1xf32> to vector<16x32xf32>
    %20 = arith.mulf %15, %19 : vector<16x32xf32>
    %21 = vector.broadcast %1 : vector<1x32xf32> to vector<16x32xf32>
    %22 = arith.mulf %20, %21 : vector<16x32xf32>
    %23 = vector.broadcast %2 : vector<1x32xf32> to vector<16x32xf32>
    %24 = arith.addf %22, %23 : vector<16x32xf32>
    %25 = arith.truncf %24 : vector<16x32xf32> to vector<16x32xbf16>
    %c0_9 = arith.constant 0 : index
    %c0_10 = arith.constant 0 : index
    %26 = vector.load %arg5[%c0_9, %c0_10] : memref<32x32xbf16, #tpu.memory_space<vmem>>, vector<32x32xbf16>
    %cst_11 = arith.constant dense<0.000000e+00> : vector<16x32xf32>
    %27 = tpu.matmul %25, %26, %cst_11 {dimension_numbers = #tpu.dot_dimension_numbers<[1], [0], [0], [1], [0, 0, 1, 1], [], []>} : vector<16x32xbf16>, vector<32x32xbf16>, vector<16x32xf32> -> vector<16x32xf32>
    %c0_12 = arith.constant 0 : index
    %c0_13 = arith.constant 0 : index
    %28 = vector.load %arg6[%c0_12, %c0_13] : memref<1x32xf32, #tpu.memory_space<vmem>>, vector<1x32xf32>
    %29 = vector.broadcast %28 : vector<1x32xf32> to vector<16x32xf32>
    %30 = arith.addf %27, %29 : vector<16x32xf32>
    %31 = arith.truncf %30 : vector<16x32xf32> to vector<16x32xbf16>
    %c0_14 = arith.constant 0 : index
    %c0_15 = arith.constant 0 : index
    %c0_16 = arith.constant 0 : index
    %c0_17 = arith.constant 0 : index
    %32 = vector.load %arg7[%c0_14, %c0_15, %c0_16, %c0_17] : memref<2x3x32x32xbf16, #tpu.memory_space<vmem>>, vector<1x1x32x32xbf16>
    %33 = vector.shape_cast %32 : vector<1x1x32x32xbf16> to vector<32x32xbf16>
    %cst_18 = arith.constant dense<0.000000e+00> : vector<16x32xf32>
    %34 = tpu.matmul %31, %33, %cst_18 {dimension_numbers = #tpu.dot_dimension_numbers<[1], [0], [0], [1], [0, 0, 1, 1], [], []>} : vector<16x32xbf16>, vector<32x32xbf16>, vector<16x32xf32> -> vector<16x32xf32>
    %c0_19 = arith.constant 0 : index
    %c0_20 = arith.constant 0 : index
    %c0_21 = arith.constant 0 : index
    %c0_22 = arith.constant 0 : index
    %35 = vector.load %arg8[%c0_19, %c0_20, %c0_21, %c0_22] : memref<2x3x1x32xf32, #tpu.memory_space<vmem>>, vector<1x1x1x32xf32>
    %36 = vector.shape_cast %35 : vector<1x1x1x32xf32> to vector<1x32xf32>
    %37 = vector.broadcast %36 : vector<1x32xf32> to vector<16x32xf32>
    %38 = arith.addf %34, %37 : vector<16x32xf32>
    %c0_23 = arith.constant 0 : index
    %c1 = arith.constant 1 : index
    %c0_24 = arith.constant 0 : index
    %c0_25 = arith.constant 0 : index
    %39 = vector.load %arg7[%c0_23, %c1, %c0_24, %c0_25] : memref<2x3x32x32xbf16, #tpu.memory_space<vmem>>, vector<1x1x32x32xbf16>
    %40 = vector.shape_cast %39 : vector<1x1x32x32xbf16> to vector<32x32xbf16>
    %cst_26 = arith.constant dense<0.000000e+00> : vector<16x32xf32>
    %41 = tpu.matmul %31, %40, %cst_26 {dimension_numbers = #tpu.dot_dimension_numbers<[1], [0], [0], [1], [0, 0, 1, 1], [], []>} : vector<16x32xbf16>, vector<32x32xbf16>, vector<16x32xf32> -> vector<16x32xf32>
    %c0_27 = arith.constant 0 : index
    %c1_28 = arith.constant 1 : index
    %c0_29 = arith.constant 0 : index
    %c0_30 = arith.constant 0 : index
    %42 = vector.load %arg8[%c0_27, %c1_28, %c0_29, %c0_30] : memref<2x3x1x32xf32, #tpu.memory_space<vmem>>, vector<1x1x1x32xf32>
    %43 = vector.shape_cast %42 : vector<1x1x1x32xf32> to vector<1x32xf32>
    %44 = vector.broadcast %43 : vector<1x32xf32> to vector<16x32xf32>
    %45 = arith.addf %41, %44 : vector<16x32xf32>
    %c0_31 = arith.constant 0 : index
    %c2 = arith.constant 2 : index
    %c0_32 = arith.constant 0 : index
    %c0_33 = arith.constant 0 : index
    %46 = vector.load %arg7[%c0_31, %c2, %c0_32, %c0_33] : memref<2x3x32x32xbf16, #tpu.memory_space<vmem>>, vector<1x1x32x32xbf16>
    %47 = vector.shape_cast %46 : vector<1x1x32x32xbf16> to vector<32x32xbf16>
    %cst_34 = arith.constant dense<0.000000e+00> : vector<16x32xf32>
    %48 = tpu.matmul %31, %47, %cst_34 {dimension_numbers = #tpu.dot_dimension_numbers<[1], [0], [0], [1], [0, 0, 1, 1], [], []>} : vector<16x32xbf16>, vector<32x32xbf16>, vector<16x32xf32> -> vector<16x32xf32>
    %c0_35 = arith.constant 0 : index
    %c2_36 = arith.constant 2 : index
    %c0_37 = arith.constant 0 : index
    %c0_38 = arith.constant 0 : index
    %49 = vector.load %arg8[%c0_35, %c2_36, %c0_37, %c0_38] : memref<2x3x1x32xf32, #tpu.memory_space<vmem>>, vector<1x1x1x32xf32>
    %50 = vector.shape_cast %49 : vector<1x1x1x32xf32> to vector<1x32xf32>
    %51 = vector.broadcast %50 : vector<1x32xf32> to vector<16x32xf32>
    %52 = arith.addf %48, %51 : vector<16x32xf32>
    %53 = vector.extract_strided_slice %38 {offsets = [0, 0], sizes = [8, 32], strides = [1, 1]} : vector<16x32xf32> to vector<8x32xf32>
    %54 = vector.extract_strided_slice %45 {offsets = [0, 0], sizes = [8, 32], strides = [1, 1]} : vector<16x32xf32> to vector<8x32xf32>
    %55 = vector.extract_strided_slice %52 {offsets = [0, 0], sizes = [8, 32], strides = [1, 1]} : vector<16x32xf32> to vector<8x32xf32>
    %56 = arith.truncf %54 : vector<8x32xf32> to vector<8x32xbf16>
    %c0_39 = arith.constant 0 : index
    %c0_40 = arith.constant 0 : index
    %c0_41 = arith.constant 0 : index
    %57 = vector.load %arg1[%c0_39, %c0_40, %c0_41] : memref<2x1x8xf32, #tpu.memory_space<vmem>>, vector<1x1x8xf32>
    %58 = vector.shape_cast %57 : vector<1x1x8xf32> to vector<1x8xf32>
    %c0_42 = arith.constant 0 : index
    %c0_43 = arith.constant 0 : index
    %c0_44 = arith.constant 0 : index
    %59 = vector.load %arg2[%c0_42, %c0_43, %c0_44] : memref<2x1x32xf32, #tpu.memory_space<vmem>>, vector<1x1x32xf32>
    %60 = vector.shape_cast %59 : vector<1x1x32xf32> to vector<1x32xf32>
    %61 = vector.broadcast %60 : vector<1x32xf32> to vector<8x32xf32>
    %62 = arith.mulf %53, %61 : vector<8x32xf32>
    %63 = arith.truncf %62 : vector<8x32xf32> to vector<8x32xbf16>
    %cst_45 = arith.constant dense<0.000000e+00> : vector<8x8xf32>
    %64 = tpu.matmul %63, %56, %cst_45 {dimension_numbers = #tpu.dot_dimension_numbers<[1], [1], [0], [0], [0, 0, 1, 0], [], []>} : vector<8x32xbf16>, vector<8x32xbf16>, vector<8x8xf32> -> vector<8x8xf32>
    %65 = vector.broadcast %58 : vector<1x8xf32> to vector<8x8xf32>
    %66 = arith.addf %64, %65 : vector<8x8xf32>
    %cst_46 = arith.constant dense<0xFF800000> : vector<8xf32>
    %67 = vector.multi_reduction <maximumf>, %66, %cst_46 [1] : vector<8x8xf32> to vector<8xf32>
    %68 = vector.shape_cast %67 : vector<8xf32> to vector<8x1xf32>
    %69 = vector.broadcast %68 : vector<8x1xf32> to vector<8x8xf32>
    %70 = arith.subf %66, %69 : vector<8x8xf32>
    %71 = math.exp %70 : vector<8x8xf32>
    %cst_47 = arith.constant dense<0.000000e+00> : vector<8xf32>
    %72 = vector.multi_reduction <add>, %71, %cst_47 [1] : vector<8x8xf32> to vector<8xf32>
    %73 = vector.shape_cast %72 : vector<8xf32> to vector<8x1xf32>
    %74 = tpu.reciprocal %73 {approx = true} : vector<8x1xf32> -> vector<8x1xf32>
    %75 = vector.broadcast %74 : vector<8x1xf32> to vector<8x8xf32>
    %76 = arith.mulf %71, %75 : vector<8x8xf32>
    %77 = arith.truncf %76 : vector<8x8xf32> to vector<8x8xbf16>
    %78 = vector.broadcast %60 : vector<1x32xf32> to vector<8x32xf32>
    %79 = arith.mulf %55, %78 : vector<8x32xf32>
    %80 = arith.truncf %79 : vector<8x32xf32> to vector<8x32xbf16>
    %cst_48 = arith.constant dense<0.000000e+00> : vector<8x32xf32>
    %81 = tpu.matmul %77, %80, %cst_48 {dimension_numbers = #tpu.dot_dimension_numbers<[1], [0], [0], [1], [0, 0, 1, 1], [], []>} : vector<8x8xbf16>, vector<8x32xbf16>, vector<8x32xf32> -> vector<8x32xf32>
    %c1_49 = arith.constant 1 : index
    %c0_50 = arith.constant 0 : index
    %c0_51 = arith.constant 0 : index
    %82 = vector.load %arg2[%c1_49, %c0_50, %c0_51] : memref<2x1x32xf32, #tpu.memory_space<vmem>>, vector<1x1x32xf32>
    %83 = vector.shape_cast %82 : vector<1x1x32xf32> to vector<1x32xf32>
    %84 = vector.broadcast %83 : vector<1x32xf32> to vector<8x32xf32>
    %85 = arith.mulf %53, %84 : vector<8x32xf32>
    %86 = arith.truncf %85 : vector<8x32xf32> to vector<8x32xbf16>
    %cst_52 = arith.constant dense<0.000000e+00> : vector<8x8xf32>
    %87 = tpu.matmul %86, %56, %cst_52 {dimension_numbers = #tpu.dot_dimension_numbers<[1], [1], [0], [0], [0, 0, 1, 0], [], []>} : vector<8x32xbf16>, vector<8x32xbf16>, vector<8x8xf32> -> vector<8x8xf32>
    %88 = vector.broadcast %58 : vector<1x8xf32> to vector<8x8xf32>
    %89 = arith.addf %87, %88 : vector<8x8xf32>
    %cst_53 = arith.constant dense<0xFF800000> : vector<8xf32>
    %90 = vector.multi_reduction <maximumf>, %89, %cst_53 [1] : vector<8x8xf32> to vector<8xf32>
    %91 = vector.shape_cast %90 : vector<8xf32> to vector<8x1xf32>
    %92 = vector.broadcast %91 : vector<8x1xf32> to vector<8x8xf32>
    %93 = arith.subf %89, %92 : vector<8x8xf32>
    %94 = math.exp %93 : vector<8x8xf32>
    %cst_54 = arith.constant dense<0.000000e+00> : vector<8xf32>
    %95 = vector.multi_reduction <add>, %94, %cst_54 [1] : vector<8x8xf32> to vector<8xf32>
    %96 = vector.shape_cast %95 : vector<8xf32> to vector<8x1xf32>
    %97 = tpu.reciprocal %96 {approx = true} : vector<8x1xf32> -> vector<8x1xf32>
    %98 = vector.broadcast %97 : vector<8x1xf32> to vector<8x8xf32>
    %99 = arith.mulf %94, %98 : vector<8x8xf32>
    %100 = arith.truncf %99 : vector<8x8xf32> to vector<8x8xbf16>
    %101 = vector.broadcast %83 : vector<1x32xf32> to vector<8x32xf32>
    %102 = arith.mulf %55, %101 : vector<8x32xf32>
    %103 = arith.truncf %102 : vector<8x32xf32> to vector<8x32xbf16>
    %cst_55 = arith.constant dense<0.000000e+00> : vector<8x32xf32>
    %104 = tpu.matmul %100, %103, %cst_55 {dimension_numbers = #tpu.dot_dimension_numbers<[1], [0], [0], [1], [0, 0, 1, 1], [], []>} : vector<8x8xbf16>, vector<8x32xbf16>, vector<8x32xf32> -> vector<8x32xf32>
    %105 = arith.addf %81, %104 : vector<8x32xf32>
    %106 = vector.extract_strided_slice %38 {offsets = [8, 0], sizes = [8, 32], strides = [1, 1]} : vector<16x32xf32> to vector<8x32xf32>
    %107 = vector.extract_strided_slice %45 {offsets = [8, 0], sizes = [8, 32], strides = [1, 1]} : vector<16x32xf32> to vector<8x32xf32>
    %108 = vector.extract_strided_slice %52 {offsets = [8, 0], sizes = [8, 32], strides = [1, 1]} : vector<16x32xf32> to vector<8x32xf32>
    %109 = arith.truncf %107 : vector<8x32xf32> to vector<8x32xbf16>
    %c1_56 = arith.constant 1 : index
    %c0_57 = arith.constant 0 : index
    %c0_58 = arith.constant 0 : index
    %110 = vector.load %arg1[%c1_56, %c0_57, %c0_58] : memref<2x1x8xf32, #tpu.memory_space<vmem>>, vector<1x1x8xf32>
    %111 = vector.shape_cast %110 : vector<1x1x8xf32> to vector<1x8xf32>
    %c0_59 = arith.constant 0 : index
    %c0_60 = arith.constant 0 : index
    %c0_61 = arith.constant 0 : index
    %112 = vector.load %arg2[%c0_59, %c0_60, %c0_61] : memref<2x1x32xf32, #tpu.memory_space<vmem>>, vector<1x1x32xf32>
    %113 = vector.shape_cast %112 : vector<1x1x32xf32> to vector<1x32xf32>
    %114 = vector.broadcast %113 : vector<1x32xf32> to vector<8x32xf32>
    %115 = arith.mulf %106, %114 : vector<8x32xf32>
    %116 = arith.truncf %115 : vector<8x32xf32> to vector<8x32xbf16>
    %cst_62 = arith.constant dense<0.000000e+00> : vector<8x8xf32>
    %117 = tpu.matmul %116, %109, %cst_62 {dimension_numbers = #tpu.dot_dimension_numbers<[1], [1], [0], [0], [0, 0, 1, 0], [], []>} : vector<8x32xbf16>, vector<8x32xbf16>, vector<8x8xf32> -> vector<8x8xf32>
    %118 = vector.broadcast %111 : vector<1x8xf32> to vector<8x8xf32>
    %119 = arith.addf %117, %118 : vector<8x8xf32>
    %cst_63 = arith.constant dense<0xFF800000> : vector<8xf32>
    %120 = vector.multi_reduction <maximumf>, %119, %cst_63 [1] : vector<8x8xf32> to vector<8xf32>
    %121 = vector.shape_cast %120 : vector<8xf32> to vector<8x1xf32>
    %122 = vector.broadcast %121 : vector<8x1xf32> to vector<8x8xf32>
    %123 = arith.subf %119, %122 : vector<8x8xf32>
    %124 = math.exp %123 : vector<8x8xf32>
    %cst_64 = arith.constant dense<0.000000e+00> : vector<8xf32>
    %125 = vector.multi_reduction <add>, %124, %cst_64 [1] : vector<8x8xf32> to vector<8xf32>
    %126 = vector.shape_cast %125 : vector<8xf32> to vector<8x1xf32>
    %127 = tpu.reciprocal %126 {approx = true} : vector<8x1xf32> -> vector<8x1xf32>
    %128 = vector.broadcast %127 : vector<8x1xf32> to vector<8x8xf32>
    %129 = arith.mulf %124, %128 : vector<8x8xf32>
    %130 = arith.truncf %129 : vector<8x8xf32> to vector<8x8xbf16>
    %131 = vector.broadcast %113 : vector<1x32xf32> to vector<8x32xf32>
    %132 = arith.mulf %108, %131 : vector<8x32xf32>
    %133 = arith.truncf %132 : vector<8x32xf32> to vector<8x32xbf16>
    %cst_65 = arith.constant dense<0.000000e+00> : vector<8x32xf32>
    %134 = tpu.matmul %130, %133, %cst_65 {dimension_numbers = #tpu.dot_dimension_numbers<[1], [0], [0], [1], [0, 0, 1, 1], [], []>} : vector<8x8xbf16>, vector<8x32xbf16>, vector<8x32xf32> -> vector<8x32xf32>
    %c1_66 = arith.constant 1 : index
    %c0_67 = arith.constant 0 : index
    %c0_68 = arith.constant 0 : index
    %135 = vector.load %arg2[%c1_66, %c0_67, %c0_68] : memref<2x1x32xf32, #tpu.memory_space<vmem>>, vector<1x1x32xf32>
    %136 = vector.shape_cast %135 : vector<1x1x32xf32> to vector<1x32xf32>
    %137 = vector.broadcast %136 : vector<1x32xf32> to vector<8x32xf32>
    %138 = arith.mulf %106, %137 : vector<8x32xf32>
    %139 = arith.truncf %138 : vector<8x32xf32> to vector<8x32xbf16>
    %cst_69 = arith.constant dense<0.000000e+00> : vector<8x8xf32>
    %140 = tpu.matmul %139, %109, %cst_69 {dimension_numbers = #tpu.dot_dimension_numbers<[1], [1], [0], [0], [0, 0, 1, 0], [], []>} : vector<8x32xbf16>, vector<8x32xbf16>, vector<8x8xf32> -> vector<8x8xf32>
    %141 = vector.broadcast %111 : vector<1x8xf32> to vector<8x8xf32>
    %142 = arith.addf %140, %141 : vector<8x8xf32>
    %cst_70 = arith.constant dense<0xFF800000> : vector<8xf32>
    %143 = vector.multi_reduction <maximumf>, %142, %cst_70 [1] : vector<8x8xf32> to vector<8xf32>
    %144 = vector.shape_cast %143 : vector<8xf32> to vector<8x1xf32>
    %145 = vector.broadcast %144 : vector<8x1xf32> to vector<8x8xf32>
    %146 = arith.subf %142, %145 : vector<8x8xf32>
    %147 = math.exp %146 : vector<8x8xf32>
    %cst_71 = arith.constant dense<0.000000e+00> : vector<8xf32>
    %148 = vector.multi_reduction <add>, %147, %cst_71 [1] : vector<8x8xf32> to vector<8xf32>
    %149 = vector.shape_cast %148 : vector<8xf32> to vector<8x1xf32>
    %150 = tpu.reciprocal %149 {approx = true} : vector<8x1xf32> -> vector<8x1xf32>
    %151 = vector.broadcast %150 : vector<8x1xf32> to vector<8x8xf32>
    %152 = arith.mulf %147, %151 : vector<8x8xf32>
    %153 = arith.truncf %152 : vector<8x8xf32> to vector<8x8xbf16>
    %154 = vector.broadcast %136 : vector<1x32xf32> to vector<8x32xf32>
    %155 = arith.mulf %108, %154 : vector<8x32xf32>
    %156 = arith.truncf %155 : vector<8x32xf32> to vector<8x32xbf16>
    %cst_72 = arith.constant dense<0.000000e+00> : vector<8x32xf32>
    %157 = tpu.matmul %153, %156, %cst_72 {dimension_numbers = #tpu.dot_dimension_numbers<[1], [0], [0], [1], [0, 0, 1, 1], [], []>} : vector<8x8xbf16>, vector<8x32xbf16>, vector<8x32xf32> -> vector<8x32xf32>
    %158 = arith.addf %134, %157 : vector<8x32xf32>
    %159 = tpu.concatenate %105, %158 in 0 : vector<8x32xf32>, vector<8x32xf32> -> vector<16x32xf32>
    %160 = arith.truncf %159 : vector<16x32xf32> to vector<16x32xbf16>
    %c0_73 = arith.constant 0 : index
    %c0_74 = arith.constant 0 : index
    %c0_75 = arith.constant 0 : index
    %161 = vector.load %arg9[%c0_73, %c0_74, %c0_75] : memref<2x32x32xbf16, #tpu.memory_space<vmem>>, vector<1x32x32xbf16>
    %162 = vector.shape_cast %161 : vector<1x32x32xbf16> to vector<32x32xbf16>
    %cst_76 = arith.constant dense<0.000000e+00> : vector<16x32xf32>
    %163 = tpu.matmul %160, %162, %cst_76 {dimension_numbers = #tpu.dot_dimension_numbers<[1], [0], [0], [1], [0, 0, 1, 1], [], []>} : vector<16x32xbf16>, vector<32x32xbf16>, vector<16x32xf32> -> vector<16x32xf32>
    %c0_77 = arith.constant 0 : index
    %c0_78 = arith.constant 0 : index
    %c0_79 = arith.constant 0 : index
    %164 = vector.load %arg10[%c0_77, %c0_78, %c0_79] : memref<2x1x32xf32, #tpu.memory_space<vmem>>, vector<1x1x32xf32>
    %165 = vector.shape_cast %164 : vector<1x1x32xf32> to vector<1x32xf32>
    %166 = vector.broadcast %165 : vector<1x32xf32> to vector<16x32xf32>
    %167 = arith.addf %163, %166 : vector<16x32xf32>
    %168 = arith.truncf %167 : vector<16x32xf32> to vector<16x32xbf16>
    %c0_80 = arith.constant 0 : index
    %c0_81 = arith.constant 0 : index
    %c0_82 = arith.constant 0 : index
    %169 = vector.load %arg11[%c0_80, %c0_81, %c0_82] : memref<2x32x64xbf16, #tpu.memory_space<vmem>>, vector<1x32x64xbf16>
    %170 = vector.shape_cast %169 : vector<1x32x64xbf16> to vector<32x64xbf16>
    %cst_83 = arith.constant dense<0.000000e+00> : vector<16x64xf32>
    %171 = tpu.matmul %168, %170, %cst_83 {dimension_numbers = #tpu.dot_dimension_numbers<[1], [0], [0], [1], [0, 0, 1, 1], [], []>} : vector<16x32xbf16>, vector<32x64xbf16>, vector<16x64xf32> -> vector<16x64xf32>
    %c0_84 = arith.constant 0 : index
    %c0_85 = arith.constant 0 : index
    %c0_86 = arith.constant 0 : index
    %172 = vector.load %arg12[%c0_84, %c0_85, %c0_86] : memref<2x1x64xf32, #tpu.memory_space<vmem>>, vector<1x1x64xf32>
    %173 = vector.shape_cast %172 : vector<1x1x64xf32> to vector<1x64xf32>
    %174 = vector.broadcast %173 : vector<1x64xf32> to vector<16x64xf32>
    %175 = arith.addf %171, %174 : vector<16x64xf32>
    %cst_87 = arith.constant 5.000000e-01 : f32
    %176 = vector.broadcast %cst_87 : f32 to vector<16x64xf32>
    %177 = arith.mulf %176, %175 : vector<16x64xf32>
    %cst_88 = arith.constant 0.707106769 : f32
    %178 = vector.broadcast %cst_88 : f32 to vector<16x64xf32>
    %179 = arith.mulf %175, %178 : vector<16x64xf32>
    %180 = math.erf %179 : vector<16x64xf32>
    %cst_89 = arith.constant 1.000000e+00 : f32
    %181 = vector.broadcast %cst_89 : f32 to vector<16x64xf32>
    %182 = arith.addf %181, %180 : vector<16x64xf32>
    %183 = arith.mulf %177, %182 : vector<16x64xf32>
    %184 = arith.truncf %183 : vector<16x64xf32> to vector<16x64xbf16>
    %c0_90 = arith.constant 0 : index
    %c0_91 = arith.constant 0 : index
    %c0_92 = arith.constant 0 : index
    %185 = vector.load %arg13[%c0_90, %c0_91, %c0_92] : memref<2x64x32xbf16, #tpu.memory_space<vmem>>, vector<1x64x32xbf16>
    %186 = vector.shape_cast %185 : vector<1x64x32xbf16> to vector<64x32xbf16>
    %cst_93 = arith.constant dense<0.000000e+00> : vector<16x32xf32>
    %187 = tpu.matmul %184, %186, %cst_93 {dimension_numbers = #tpu.dot_dimension_numbers<[1], [0], [0], [1], [0, 0, 1, 1], [], []>} : vector<16x64xbf16>, vector<64x32xbf16>, vector<16x32xf32> -> vector<16x32xf32>
    %c0_94 = arith.constant 0 : index
    %c0_95 = arith.constant 0 : index
    %c0_96 = arith.constant 0 : index
    %188 = vector.load %arg14[%c0_94, %c0_95, %c0_96] : memref<2x1x32xf32, #tpu.memory_space<vmem>>, vector<1x1x32xf32>
    %189 = vector.shape_cast %188 : vector<1x1x32xf32> to vector<1x32xf32>
    %190 = vector.broadcast %189 : vector<1x32xf32> to vector<16x32xf32>
    %191 = arith.addf %187, %190 : vector<16x32xf32>
    %192 = arith.addf %30, %191 : vector<16x32xf32>
    %c0_97 = arith.constant 0 : index
    %c0_98 = arith.constant 0 : index
    %c0_99 = arith.constant 0 : index
    %193 = vector.load %arg15[%c0_97, %c0_98, %c0_99] : memref<2x1x32xf32, #tpu.memory_space<vmem>>, vector<1x1x32xf32>
    %194 = vector.shape_cast %193 : vector<1x1x32xf32> to vector<1x32xf32>
    %c0_100 = arith.constant 0 : index
    %c0_101 = arith.constant 0 : index
    %c0_102 = arith.constant 0 : index
    %195 = vector.load %arg16[%c0_100, %c0_101, %c0_102] : memref<2x1x32xf32, #tpu.memory_space<vmem>>, vector<1x1x32xf32>
    %196 = vector.shape_cast %195 : vector<1x1x32xf32> to vector<1x32xf32>
    %cst_103 = arith.constant dense<0.000000e+00> : vector<16xf32>
    %197 = vector.multi_reduction <add>, %192, %cst_103 [1] : vector<16x32xf32> to vector<16xf32>
    %198 = vector.shape_cast %197 : vector<16xf32> to vector<16x1xf32>
    %cst_104 = arith.constant 3.200000e+01 : f32
    %199 = vector.broadcast %cst_104 : f32 to vector<16x1xf32>
    %200 = arith.divf %198, %199 : vector<16x1xf32>
    %201 = vector.broadcast %200 : vector<16x1xf32> to vector<16x32xf32>
    %202 = arith.subf %192, %201 : vector<16x32xf32>
    %203 = arith.mulf %202, %202 : vector<16x32xf32>
    %cst_105 = arith.constant dense<0.000000e+00> : vector<16xf32>
    %204 = vector.multi_reduction <add>, %203, %cst_105 [1] : vector<16x32xf32> to vector<16xf32>
    %205 = vector.shape_cast %204 : vector<16xf32> to vector<16x1xf32>
    %cst_106 = arith.constant 3.200000e+01 : f32
    %206 = vector.broadcast %cst_106 : f32 to vector<16x1xf32>
    %207 = arith.divf %205, %206 : vector<16x1xf32>
    %208 = vector.broadcast %200 : vector<16x1xf32> to vector<16x32xf32>
    %209 = arith.subf %192, %208 : vector<16x32xf32>
    %cst_107 = arith.constant 9.99999974E-6 : f32
    %210 = vector.broadcast %cst_107 : f32 to vector<16x1xf32>
    %211 = arith.addf %207, %210 : vector<16x1xf32>
    %212 = math.rsqrt %211 : vector<16x1xf32>
    %213 = vector.broadcast %212 : vector<16x1xf32> to vector<16x32xf32>
    %214 = arith.mulf %209, %213 : vector<16x32xf32>
    %215 = vector.broadcast %194 : vector<1x32xf32> to vector<16x32xf32>
    %216 = arith.mulf %214, %215 : vector<16x32xf32>
    %217 = vector.broadcast %196 : vector<1x32xf32> to vector<16x32xf32>
    %218 = arith.addf %216, %217 : vector<16x32xf32>
    %219 = arith.truncf %218 : vector<16x32xf32> to vector<16x32xbf16>
    %c1_108 = arith.constant 1 : index
    %c0_109 = arith.constant 0 : index
    %c0_110 = arith.constant 0 : index
    %c0_111 = arith.constant 0 : index
    %220 = vector.load %arg7[%c1_108, %c0_109, %c0_110, %c0_111] : memref<2x3x32x32xbf16, #tpu.memory_space<vmem>>, vector<1x1x32x32xbf16>
    %221 = vector.shape_cast %220 : vector<1x1x32x32xbf16> to vector<32x32xbf16>
    %cst_112 = arith.constant dense<0.000000e+00> : vector<16x32xf32>
    %222 = tpu.matmul %219, %221, %cst_112 {dimension_numbers = #tpu.dot_dimension_numbers<[1], [0], [0], [1], [0, 0, 1, 1], [], []>} : vector<16x32xbf16>, vector<32x32xbf16>, vector<16x32xf32> -> vector<16x32xf32>
    %c1_113 = arith.constant 1 : index
    %c0_114 = arith.constant 0 : index
    %c0_115 = arith.constant 0 : index
    %c0_116 = arith.constant 0 : index
    %223 = vector.load %arg8[%c1_113, %c0_114, %c0_115, %c0_116] : memref<2x3x1x32xf32, #tpu.memory_space<vmem>>, vector<1x1x1x32xf32>
    %224 = vector.shape_cast %223 : vector<1x1x1x32xf32> to vector<1x32xf32>
    %225 = vector.broadcast %224 : vector<1x32xf32> to vector<16x32xf32>
    %226 = arith.addf %222, %225 : vector<16x32xf32>
    %c1_117 = arith.constant 1 : index
    %c1_118 = arith.constant 1 : index
    %c0_119 = arith.constant 0 : index
    %c0_120 = arith.constant 0 : index
    %227 = vector.load %arg7[%c1_117, %c1_118, %c0_119, %c0_120] : memref<2x3x32x32xbf16, #tpu.memory_space<vmem>>, vector<1x1x32x32xbf16>
    %228 = vector.shape_cast %227 : vector<1x1x32x32xbf16> to vector<32x32xbf16>
    %cst_121 = arith.constant dense<0.000000e+00> : vector<16x32xf32>
    %229 = tpu.matmul %219, %228, %cst_121 {dimension_numbers = #tpu.dot_dimension_numbers<[1], [0], [0], [1], [0, 0, 1, 1], [], []>} : vector<16x32xbf16>, vector<32x32xbf16>, vector<16x32xf32> -> vector<16x32xf32>
    %c1_122 = arith.constant 1 : index
    %c1_123 = arith.constant 1 : index
    %c0_124 = arith.constant 0 : index
    %c0_125 = arith.constant 0 : index
    %230 = vector.load %arg8[%c1_122, %c1_123, %c0_124, %c0_125] : memref<2x3x1x32xf32, #tpu.memory_space<vmem>>, vector<1x1x1x32xf32>
    %231 = vector.shape_cast %230 : vector<1x1x1x32xf32> to vector<1x32xf32>
    %232 = vector.broadcast %231 : vector<1x32xf32> to vector<16x32xf32>
    %233 = arith.addf %229, %232 : vector<16x32xf32>
    %c1_126 = arith.constant 1 : index
    %c2_127 = arith.constant 2 : index
    %c0_128 = arith.constant 0 : index
    %c0_129 = arith.constant 0 : index
    %234 = vector.load %arg7[%c1_126, %c2_127, %c0_128, %c0_129] : memref<2x3x32x32xbf16, #tpu.memory_space<vmem>>, vector<1x1x32x32xbf16>
    %235 = vector.shape_cast %234 : vector<1x1x32x32xbf16> to vector<32x32xbf16>
    %cst_130 = arith.constant dense<0.000000e+00> : vector<16x32xf32>
    %236 = tpu.matmul %219, %235, %cst_130 {dimension_numbers = #tpu.dot_dimension_numbers<[1], [0], [0], [1], [0, 0, 1, 1], [], []>} : vector<16x32xbf16>, vector<32x32xbf16>, vector<16x32xf32> -> vector<16x32xf32>
    %c1_131 = arith.constant 1 : index
    %c2_132 = arith.constant 2 : index
    %c0_133 = arith.constant 0 : index
    %c0_134 = arith.constant 0 : index
    %237 = vector.load %arg8[%c1_131, %c2_132, %c0_133, %c0_134] : memref<2x3x1x32xf32, #tpu.memory_space<vmem>>, vector<1x1x1x32xf32>
    %238 = vector.shape_cast %237 : vector<1x1x1x32xf32> to vector<1x32xf32>
    %239 = vector.broadcast %238 : vector<1x32xf32> to vector<16x32xf32>
    %240 = arith.addf %236, %239 : vector<16x32xf32>
    %241 = vector.extract_strided_slice %226 {offsets = [0, 0], sizes = [8, 32], strides = [1, 1]} : vector<16x32xf32> to vector<8x32xf32>
    %242 = vector.extract_strided_slice %233 {offsets = [0, 0], sizes = [8, 32], strides = [1, 1]} : vector<16x32xf32> to vector<8x32xf32>
    %243 = vector.extract_strided_slice %240 {offsets = [0, 0], sizes = [8, 32], strides = [1, 1]} : vector<16x32xf32> to vector<8x32xf32>
    %244 = arith.truncf %242 : vector<8x32xf32> to vector<8x32xbf16>
    %c0_135 = arith.constant 0 : index
    %c0_136 = arith.constant 0 : index
    %c0_137 = arith.constant 0 : index
    %245 = vector.load %arg1[%c0_135, %c0_136, %c0_137] : memref<2x1x8xf32, #tpu.memory_space<vmem>>, vector<1x1x8xf32>
    %246 = vector.shape_cast %245 : vector<1x1x8xf32> to vector<1x8xf32>
    %c0_138 = arith.constant 0 : index
    %c0_139 = arith.constant 0 : index
    %c0_140 = arith.constant 0 : index
    %247 = vector.load %arg2[%c0_138, %c0_139, %c0_140] : memref<2x1x32xf32, #tpu.memory_space<vmem>>, vector<1x1x32xf32>
    %248 = vector.shape_cast %247 : vector<1x1x32xf32> to vector<1x32xf32>
    %249 = vector.broadcast %248 : vector<1x32xf32> to vector<8x32xf32>
    %250 = arith.mulf %241, %249 : vector<8x32xf32>
    %251 = arith.truncf %250 : vector<8x32xf32> to vector<8x32xbf16>
    %cst_141 = arith.constant dense<0.000000e+00> : vector<8x8xf32>
    %252 = tpu.matmul %251, %244, %cst_141 {dimension_numbers = #tpu.dot_dimension_numbers<[1], [1], [0], [0], [0, 0, 1, 0], [], []>} : vector<8x32xbf16>, vector<8x32xbf16>, vector<8x8xf32> -> vector<8x8xf32>
    %253 = vector.broadcast %246 : vector<1x8xf32> to vector<8x8xf32>
    %254 = arith.addf %252, %253 : vector<8x8xf32>
    %cst_142 = arith.constant dense<0xFF800000> : vector<8xf32>
    %255 = vector.multi_reduction <maximumf>, %254, %cst_142 [1] : vector<8x8xf32> to vector<8xf32>
    %256 = vector.shape_cast %255 : vector<8xf32> to vector<8x1xf32>
    %257 = vector.broadcast %256 : vector<8x1xf32> to vector<8x8xf32>
    %258 = arith.subf %254, %257 : vector<8x8xf32>
    %259 = math.exp %258 : vector<8x8xf32>
    %cst_143 = arith.constant dense<0.000000e+00> : vector<8xf32>
    %260 = vector.multi_reduction <add>, %259, %cst_143 [1] : vector<8x8xf32> to vector<8xf32>
    %261 = vector.shape_cast %260 : vector<8xf32> to vector<8x1xf32>
    %262 = tpu.reciprocal %261 {approx = true} : vector<8x1xf32> -> vector<8x1xf32>
    %263 = vector.broadcast %262 : vector<8x1xf32> to vector<8x8xf32>
    %264 = arith.mulf %259, %263 : vector<8x8xf32>
    %265 = arith.truncf %264 : vector<8x8xf32> to vector<8x8xbf16>
    %266 = vector.broadcast %248 : vector<1x32xf32> to vector<8x32xf32>
    %267 = arith.mulf %243, %266 : vector<8x32xf32>
    %268 = arith.truncf %267 : vector<8x32xf32> to vector<8x32xbf16>
    %cst_144 = arith.constant dense<0.000000e+00> : vector<8x32xf32>
    %269 = tpu.matmul %265, %268, %cst_144 {dimension_numbers = #tpu.dot_dimension_numbers<[1], [0], [0], [1], [0, 0, 1, 1], [], []>} : vector<8x8xbf16>, vector<8x32xbf16>, vector<8x32xf32> -> vector<8x32xf32>
    %c1_145 = arith.constant 1 : index
    %c0_146 = arith.constant 0 : index
    %c0_147 = arith.constant 0 : index
    %270 = vector.load %arg2[%c1_145, %c0_146, %c0_147] : memref<2x1x32xf32, #tpu.memory_space<vmem>>, vector<1x1x32xf32>
    %271 = vector.shape_cast %270 : vector<1x1x32xf32> to vector<1x32xf32>
    %272 = vector.broadcast %271 : vector<1x32xf32> to vector<8x32xf32>
    %273 = arith.mulf %241, %272 : vector<8x32xf32>
    %274 = arith.truncf %273 : vector<8x32xf32> to vector<8x32xbf16>
    %cst_148 = arith.constant dense<0.000000e+00> : vector<8x8xf32>
    %275 = tpu.matmul %274, %244, %cst_148 {dimension_numbers = #tpu.dot_dimension_numbers<[1], [1], [0], [0], [0, 0, 1, 0], [], []>} : vector<8x32xbf16>, vector<8x32xbf16>, vector<8x8xf32> -> vector<8x8xf32>
    %276 = vector.broadcast %246 : vector<1x8xf32> to vector<8x8xf32>
    %277 = arith.addf %275, %276 : vector<8x8xf32>
    %cst_149 = arith.constant dense<0xFF800000> : vector<8xf32>
    %278 = vector.multi_reduction <maximumf>, %277, %cst_149 [1] : vector<8x8xf32> to vector<8xf32>
    %279 = vector.shape_cast %278 : vector<8xf32> to vector<8x1xf32>
    %280 = vector.broadcast %279 : vector<8x1xf32> to vector<8x8xf32>
    %281 = arith.subf %277, %280 : vector<8x8xf32>
    %282 = math.exp %281 : vector<8x8xf32>
    %cst_150 = arith.constant dense<0.000000e+00> : vector<8xf32>
    %283 = vector.multi_reduction <add>, %282, %cst_150 [1] : vector<8x8xf32> to vector<8xf32>
    %284 = vector.shape_cast %283 : vector<8xf32> to vector<8x1xf32>
    %285 = tpu.reciprocal %284 {approx = true} : vector<8x1xf32> -> vector<8x1xf32>
    %286 = vector.broadcast %285 : vector<8x1xf32> to vector<8x8xf32>
    %287 = arith.mulf %282, %286 : vector<8x8xf32>
    %288 = arith.truncf %287 : vector<8x8xf32> to vector<8x8xbf16>
    %289 = vector.broadcast %271 : vector<1x32xf32> to vector<8x32xf32>
    %290 = arith.mulf %243, %289 : vector<8x32xf32>
    %291 = arith.truncf %290 : vector<8x32xf32> to vector<8x32xbf16>
    %cst_151 = arith.constant dense<0.000000e+00> : vector<8x32xf32>
    %292 = tpu.matmul %288, %291, %cst_151 {dimension_numbers = #tpu.dot_dimension_numbers<[1], [0], [0], [1], [0, 0, 1, 1], [], []>} : vector<8x8xbf16>, vector<8x32xbf16>, vector<8x32xf32> -> vector<8x32xf32>
    %293 = arith.addf %269, %292 : vector<8x32xf32>
    %294 = vector.extract_strided_slice %226 {offsets = [8, 0], sizes = [8, 32], strides = [1, 1]} : vector<16x32xf32> to vector<8x32xf32>
    %295 = vector.extract_strided_slice %233 {offsets = [8, 0], sizes = [8, 32], strides = [1, 1]} : vector<16x32xf32> to vector<8x32xf32>
    %296 = vector.extract_strided_slice %240 {offsets = [8, 0], sizes = [8, 32], strides = [1, 1]} : vector<16x32xf32> to vector<8x32xf32>
    %297 = arith.truncf %295 : vector<8x32xf32> to vector<8x32xbf16>
    %c1_152 = arith.constant 1 : index
    %c0_153 = arith.constant 0 : index
    %c0_154 = arith.constant 0 : index
    %298 = vector.load %arg1[%c1_152, %c0_153, %c0_154] : memref<2x1x8xf32, #tpu.memory_space<vmem>>, vector<1x1x8xf32>
    %299 = vector.shape_cast %298 : vector<1x1x8xf32> to vector<1x8xf32>
    %c0_155 = arith.constant 0 : index
    %c0_156 = arith.constant 0 : index
    %c0_157 = arith.constant 0 : index
    %300 = vector.load %arg2[%c0_155, %c0_156, %c0_157] : memref<2x1x32xf32, #tpu.memory_space<vmem>>, vector<1x1x32xf32>
    %301 = vector.shape_cast %300 : vector<1x1x32xf32> to vector<1x32xf32>
    %302 = vector.broadcast %301 : vector<1x32xf32> to vector<8x32xf32>
    %303 = arith.mulf %294, %302 : vector<8x32xf32>
    %304 = arith.truncf %303 : vector<8x32xf32> to vector<8x32xbf16>
    %cst_158 = arith.constant dense<0.000000e+00> : vector<8x8xf32>
    %305 = tpu.matmul %304, %297, %cst_158 {dimension_numbers = #tpu.dot_dimension_numbers<[1], [1], [0], [0], [0, 0, 1, 0], [], []>} : vector<8x32xbf16>, vector<8x32xbf16>, vector<8x8xf32> -> vector<8x8xf32>
    %306 = vector.broadcast %299 : vector<1x8xf32> to vector<8x8xf32>
    %307 = arith.addf %305, %306 : vector<8x8xf32>
    %cst_159 = arith.constant dense<0xFF800000> : vector<8xf32>
    %308 = vector.multi_reduction <maximumf>, %307, %cst_159 [1] : vector<8x8xf32> to vector<8xf32>
    %309 = vector.shape_cast %308 : vector<8xf32> to vector<8x1xf32>
    %310 = vector.broadcast %309 : vector<8x1xf32> to vector<8x8xf32>
    %311 = arith.subf %307, %310 : vector<8x8xf32>
    %312 = math.exp %311 : vector<8x8xf32>
    %cst_160 = arith.constant dense<0.000000e+00> : vector<8xf32>
    %313 = vector.multi_reduction <add>, %312, %cst_160 [1] : vector<8x8xf32> to vector<8xf32>
    %314 = vector.shape_cast %313 : vector<8xf32> to vector<8x1xf32>
    %315 = tpu.reciprocal %314 {approx = true} : vector<8x1xf32> -> vector<8x1xf32>
    %316 = vector.broadcast %315 : vector<8x1xf32> to vector<8x8xf32>
    %317 = arith.mulf %312, %316 : vector<8x8xf32>
    %318 = arith.truncf %317 : vector<8x8xf32> to vector<8x8xbf16>
    %319 = vector.broadcast %301 : vector<1x32xf32> to vector<8x32xf32>
    %320 = arith.mulf %296, %319 : vector<8x32xf32>
    %321 = arith.truncf %320 : vector<8x32xf32> to vector<8x32xbf16>
    %cst_161 = arith.constant dense<0.000000e+00> : vector<8x32xf32>
    %322 = tpu.matmul %318, %321, %cst_161 {dimension_numbers = #tpu.dot_dimension_numbers<[1], [0], [0], [1], [0, 0, 1, 1], [], []>} : vector<8x8xbf16>, vector<8x32xbf16>, vector<8x32xf32> -> vector<8x32xf32>
    %c1_162 = arith.constant 1 : index
    %c0_163 = arith.constant 0 : index
    %c0_164 = arith.constant 0 : index
    %323 = vector.load %arg2[%c1_162, %c0_163, %c0_164] : memref<2x1x32xf32, #tpu.memory_space<vmem>>, vector<1x1x32xf32>
    %324 = vector.shape_cast %323 : vector<1x1x32xf32> to vector<1x32xf32>
    %325 = vector.broadcast %324 : vector<1x32xf32> to vector<8x32xf32>
    %326 = arith.mulf %294, %325 : vector<8x32xf32>
    %327 = arith.truncf %326 : vector<8x32xf32> to vector<8x32xbf16>
    %cst_165 = arith.constant dense<0.000000e+00> : vector<8x8xf32>
    %328 = tpu.matmul %327, %297, %cst_165 {dimension_numbers = #tpu.dot_dimension_numbers<[1], [1], [0], [0], [0, 0, 1, 0], [], []>} : vector<8x32xbf16>, vector<8x32xbf16>, vector<8x8xf32> -> vector<8x8xf32>
    %329 = vector.broadcast %299 : vector<1x8xf32> to vector<8x8xf32>
    %330 = arith.addf %328, %329 : vector<8x8xf32>
    %cst_166 = arith.constant dense<0xFF800000> : vector<8xf32>
    %331 = vector.multi_reduction <maximumf>, %330, %cst_166 [1] : vector<8x8xf32> to vector<8xf32>
    %332 = vector.shape_cast %331 : vector<8xf32> to vector<8x1xf32>
    %333 = vector.broadcast %332 : vector<8x1xf32> to vector<8x8xf32>
    %334 = arith.subf %330, %333 : vector<8x8xf32>
    %335 = math.exp %334 : vector<8x8xf32>
    %cst_167 = arith.constant dense<0.000000e+00> : vector<8xf32>
    %336 = vector.multi_reduction <add>, %335, %cst_167 [1] : vector<8x8xf32> to vector<8xf32>
    %337 = vector.shape_cast %336 : vector<8xf32> to vector<8x1xf32>
    %338 = tpu.reciprocal %337 {approx = true} : vector<8x1xf32> -> vector<8x1xf32>
    %339 = vector.broadcast %338 : vector<8x1xf32> to vector<8x8xf32>
    %340 = arith.mulf %335, %339 : vector<8x8xf32>
    %341 = arith.truncf %340 : vector<8x8xf32> to vector<8x8xbf16>
    %342 = vector.broadcast %324 : vector<1x32xf32> to vector<8x32xf32>
    %343 = arith.mulf %296, %342 : vector<8x32xf32>
    %344 = arith.truncf %343 : vector<8x32xf32> to vector<8x32xbf16>
    %cst_168 = arith.constant dense<0.000000e+00> : vector<8x32xf32>
    %345 = tpu.matmul %341, %344, %cst_168 {dimension_numbers = #tpu.dot_dimension_numbers<[1], [0], [0], [1], [0, 0, 1, 1], [], []>} : vector<8x8xbf16>, vector<8x32xbf16>, vector<8x32xf32> -> vector<8x32xf32>
    %346 = arith.addf %322, %345 : vector<8x32xf32>
    %347 = tpu.concatenate %293, %346 in 0 : vector<8x32xf32>, vector<8x32xf32> -> vector<16x32xf32>
    %348 = arith.truncf %347 : vector<16x32xf32> to vector<16x32xbf16>
    %c1_169 = arith.constant 1 : index
    %c0_170 = arith.constant 0 : index
    %c0_171 = arith.constant 0 : index
    %349 = vector.load %arg9[%c1_169, %c0_170, %c0_171] : memref<2x32x32xbf16, #tpu.memory_space<vmem>>, vector<1x32x32xbf16>
    %350 = vector.shape_cast %349 : vector<1x32x32xbf16> to vector<32x32xbf16>
    %cst_172 = arith.constant dense<0.000000e+00> : vector<16x32xf32>
    %351 = tpu.matmul %348, %350, %cst_172 {dimension_numbers = #tpu.dot_dimension_numbers<[1], [0], [0], [1], [0, 0, 1, 1], [], []>} : vector<16x32xbf16>, vector<32x32xbf16>, vector<16x32xf32> -> vector<16x32xf32>
    %c1_173 = arith.constant 1 : index
    %c0_174 = arith.constant 0 : index
    %c0_175 = arith.constant 0 : index
    %352 = vector.load %arg10[%c1_173, %c0_174, %c0_175] : memref<2x1x32xf32, #tpu.memory_space<vmem>>, vector<1x1x32xf32>
    %353 = vector.shape_cast %352 : vector<1x1x32xf32> to vector<1x32xf32>
    %354 = vector.broadcast %353 : vector<1x32xf32> to vector<16x32xf32>
    %355 = arith.addf %351, %354 : vector<16x32xf32>
    %356 = arith.truncf %355 : vector<16x32xf32> to vector<16x32xbf16>
    %c1_176 = arith.constant 1 : index
    %c0_177 = arith.constant 0 : index
    %c0_178 = arith.constant 0 : index
    %357 = vector.load %arg11[%c1_176, %c0_177, %c0_178] : memref<2x32x64xbf16, #tpu.memory_space<vmem>>, vector<1x32x64xbf16>
    %358 = vector.shape_cast %357 : vector<1x32x64xbf16> to vector<32x64xbf16>
    %cst_179 = arith.constant dense<0.000000e+00> : vector<16x64xf32>
    %359 = tpu.matmul %356, %358, %cst_179 {dimension_numbers = #tpu.dot_dimension_numbers<[1], [0], [0], [1], [0, 0, 1, 1], [], []>} : vector<16x32xbf16>, vector<32x64xbf16>, vector<16x64xf32> -> vector<16x64xf32>
    %c1_180 = arith.constant 1 : index
    %c0_181 = arith.constant 0 : index
    %c0_182 = arith.constant 0 : index
    %360 = vector.load %arg12[%c1_180, %c0_181, %c0_182] : memref<2x1x64xf32, #tpu.memory_space<vmem>>, vector<1x1x64xf32>
    %361 = vector.shape_cast %360 : vector<1x1x64xf32> to vector<1x64xf32>
    %362 = vector.broadcast %361 : vector<1x64xf32> to vector<16x64xf32>
    %363 = arith.addf %359, %362 : vector<16x64xf32>
    %cst_183 = arith.constant 5.000000e-01 : f32
    %364 = vector.broadcast %cst_183 : f32 to vector<16x64xf32>
    %365 = arith.mulf %364, %363 : vector<16x64xf32>
    %cst_184 = arith.constant 0.707106769 : f32
    %366 = vector.broadcast %cst_184 : f32 to vector<16x64xf32>
    %367 = arith.mulf %363, %366 : vector<16x64xf32>
    %368 = math.erf %367 : vector<16x64xf32>
    %cst_185 = arith.constant 1.000000e+00 : f32
    %369 = vector.broadcast %cst_185 : f32 to vector<16x64xf32>
    %370 = arith.addf %369, %368 : vector<16x64xf32>
    %371 = arith.mulf %365, %370 : vector<16x64xf32>
    %372 = arith.truncf %371 : vector<16x64xf32> to vector<16x64xbf16>
    %c1_186 = arith.constant 1 : index
    %c0_187 = arith.constant 0 : index
    %c0_188 = arith.constant 0 : index
    %373 = vector.load %arg13[%c1_186, %c0_187, %c0_188] : memref<2x64x32xbf16, #tpu.memory_space<vmem>>, vector<1x64x32xbf16>
    %374 = vector.shape_cast %373 : vector<1x64x32xbf16> to vector<64x32xbf16>
    %cst_189 = arith.constant dense<0.000000e+00> : vector<16x32xf32>
    %375 = tpu.matmul %372, %374, %cst_189 {dimension_numbers = #tpu.dot_dimension_numbers<[1], [0], [0], [1], [0, 0, 1, 1], [], []>} : vector<16x64xbf16>, vector<64x32xbf16>, vector<16x32xf32> -> vector<16x32xf32>
    %c1_190 = arith.constant 1 : index
    %c0_191 = arith.constant 0 : index
    %c0_192 = arith.constant 0 : index
    %376 = vector.load %arg14[%c1_190, %c0_191, %c0_192] : memref<2x1x32xf32, #tpu.memory_space<vmem>>, vector<1x1x32xf32>
    %377 = vector.shape_cast %376 : vector<1x1x32xf32> to vector<1x32xf32>
    %378 = vector.broadcast %377 : vector<1x32xf32> to vector<16x32xf32>
    %379 = arith.addf %375, %378 : vector<16x32xf32>
    %380 = arith.addf %218, %379 : vector<16x32xf32>
    %c1_193 = arith.constant 1 : index
    %c0_194 = arith.constant 0 : index
    %c0_195 = arith.constant 0 : index
    %381 = vector.load %arg15[%c1_193, %c0_194, %c0_195] : memref<2x1x32xf32, #tpu.memory_space<vmem>>, vector<1x1x32xf32>
    %382 = vector.shape_cast %381 : vector<1x1x32xf32> to vector<1x32xf32>
    %c1_196 = arith.constant 1 : index
    %c0_197 = arith.constant 0 : index
    %c0_198 = arith.constant 0 : index
    %383 = vector.load %arg16[%c1_196, %c0_197, %c0_198] : memref<2x1x32xf32, #tpu.memory_space<vmem>>, vector<1x1x32xf32>
    %384 = vector.shape_cast %383 : vector<1x1x32xf32> to vector<1x32xf32>
    %cst_199 = arith.constant dense<0.000000e+00> : vector<16xf32>
    %385 = vector.multi_reduction <add>, %380, %cst_199 [1] : vector<16x32xf32> to vector<16xf32>
    %386 = vector.shape_cast %385 : vector<16xf32> to vector<16x1xf32>
    %cst_200 = arith.constant 3.200000e+01 : f32
    %387 = vector.broadcast %cst_200 : f32 to vector<16x1xf32>
    %388 = arith.divf %386, %387 : vector<16x1xf32>
    %389 = vector.broadcast %388 : vector<16x1xf32> to vector<16x32xf32>
    %390 = arith.subf %380, %389 : vector<16x32xf32>
    %391 = arith.mulf %390, %390 : vector<16x32xf32>
    %cst_201 = arith.constant dense<0.000000e+00> : vector<16xf32>
    %392 = vector.multi_reduction <add>, %391, %cst_201 [1] : vector<16x32xf32> to vector<16xf32>
    %393 = vector.shape_cast %392 : vector<16xf32> to vector<16x1xf32>
    %cst_202 = arith.constant 3.200000e+01 : f32
    %394 = vector.broadcast %cst_202 : f32 to vector<16x1xf32>
    %395 = arith.divf %393, %394 : vector<16x1xf32>
    %396 = vector.broadcast %388 : vector<16x1xf32> to vector<16x32xf32>
    %397 = arith.subf %380, %396 : vector<16x32xf32>
    %cst_203 = arith.constant 9.99999974E-6 : f32
    %398 = vector.broadcast %cst_203 : f32 to vector<16x1xf32>
    %399 = arith.addf %395, %398 : vector<16x1xf32>
    %400 = math.rsqrt %399 : vector<16x1xf32>
    %401 = vector.broadcast %400 : vector<16x1xf32> to vector<16x32xf32>
    %402 = arith.mulf %397, %401 : vector<16x32xf32>
    %403 = vector.broadcast %382 : vector<1x32xf32> to vector<16x32xf32>
    %404 = arith.mulf %402, %403 : vector<16x32xf32>
    %405 = vector.broadcast %384 : vector<1x32xf32> to vector<16x32xf32>
    %406 = arith.addf %404, %405 : vector<16x32xf32>
    %c0_204 = arith.constant 0 : index
    %c0_205 = arith.constant 0 : index
    %407 = vector.load %arg17[%c0_204, %c0_205] : memref<16x32xf32, #tpu.memory_space<vmem>>, vector<16x32xf32>
    tpu.vector_store %arg17[%c0_204, %c0_205], %406 {strides = array<i32>} : memref<16x32xf32, #tpu.memory_space<vmem>>, vector<16x32xf32>,
    return
  }
}

</mosaic_0001>

<llo_original>
// kernel: tpu_custom_call.1
$region0: #{tpu_custom_call.1}
  #allocation0 [shape = 'u32[]', space=smem, size = 0x4, offset = 0x4, fixed_abs, tag = 'smem constant byte address 0x4 - core index']
  #allocation1 [shape = 'u32[144,128]{1,0:T(1,128)}', space=vmem, size = 0x12000, scoped, tag = 'internal scratch']
  %s0 = inlined_call_operand.hbm [shape: f32[16,32], index: 0, kind: input, shape index: {}]
  %s1 = inlined_call_operand.vmem [shape: f32[2,1,8], index: 1, kind: input, shape index: {}]
  %s2 = inlined_call_operand.vmem [shape: f32[2,1,32], index: 2, kind: input, shape index: {}]
  %s3 = inlined_call_operand.hbm [shape: f32[1,32], index: 3, kind: input, shape index: {}]
  %s4 = inlined_call_operand.hbm [shape: f32[1,32], index: 4, kind: input, shape index: {}]
  %s5 = inlined_call_operand.hbm [shape: bf16[32,32], index: 5, kind: input, shape index: {}]
  %s6 = inlined_call_operand.hbm [shape: f32[1,32], index: 6, kind: input, shape index: {}]
  %s7 = inlined_call_operand.vmem [shape: bf16[2,3,32,32], index: 7, kind: input, shape index: {}]
  %s8 = inlined_call_operand.vmem [shape: f32[2,3,1,32], index: 8, kind: input, shape index: {}]
  %s9 = inlined_call_operand.hbm [shape: bf16[2,32,32], index: 9, kind: input, shape index: {}]
  %s10 = inlined_call_operand.vmem [shape: f32[2,1,32], index: 10, kind: input, shape index: {}]
  %s11 = inlined_call_operand.hbm [shape: bf16[2,32,64], index: 11, kind: input, shape index: {}]
  %s12 = inlined_call_operand.vmem [shape: f32[2,1,64], index: 12, kind: input, shape index: {}]
  %s13 = inlined_call_operand.vmem [shape: bf16[2,64,32], index: 13, kind: input, shape index: {}]
  %s14 = inlined_call_operand.vmem [shape: f32[2,1,32], index: 14, kind: input, shape index: {}]
  %s15 = inlined_call_operand.vmem [shape: f32[2,1,32], index: 15, kind: input, shape index: {}]
  %s16 = inlined_call_operand.vmem [shape: f32[2,1,32], index: 16, kind: input, shape index: {}]
  %s17 = inlined_call_operand.hbm [shape: f32[16,32], index: 17, kind: output, shape index: {}]
  %s18 = sld [smem:[#allocation0]]
  $region106: #{tpu_custom_call.1} parent=0
    _
  %s20 = ssub.s32 1, %s18
  %s21 = scalar_select 0, %s20, %s18
  $region1: #{tpu_custom_call.1} parent=0
    #allocation2 [shape = 'u8[8192]{0}', space=vmem, size = 0x2000, scoped, tag = 'input window, operand 0, single buffered']
    #allocation3 [shape = 's32[1]{0}', space=sflag, size = 0x4, scoped, tag = 'scoped memory for tpu_custom_call.1']
    #allocation4 [shape = 's32[1]{0}', space=sflag, size = 0x4, scoped, tag = 'scoped memory for tpu_custom_call.1']
    #allocation5 [shape = 'u8[512]{0}', space=vmem, size = 0x400, scoped, tag = 'input window, operand 3, single buffered']
    #allocation6 [shape = 's32[1]{0}', space=sflag, size = 0x4, scoped, tag = 'scoped memory for tpu_custom_call.1']
    #allocation7 [shape = 'u8[512]{0}', space=vmem, size = 0x400, scoped, tag = 'input window, operand 4, single buffered']
    #allocation8 [shape = 'u8[8192]{0}', space=vmem, size = 0x2000, scoped, tag = 'input window, operand 5, single buffered']
    #allocation9 [shape = 's32[1]{0}', space=sflag, size = 0x4, scoped, tag = 'scoped memory for tpu_custom_call.1']
    #allocation10 [shape = 'u8[512]{0}', space=vmem, size = 0x400, scoped, tag = 'input window, operand 6, single buffered']
    #allocation11 [shape = 'u8[16384]{0}', space=vmem, size = 0x4000, scoped, tag = 'input window, operand 9, single buffered']
    #allocation12 [shape = 's32[1]{0}', space=sflag, size = 0x4, scoped, tag = 'scoped memory for tpu_custom_call.1']
    #allocation13 [shape = 'u8[16384]{0}', space=vmem, size = 0x4000, scoped, tag = 'input window, operand 11, single buffered']
    #allocation14 [shape = 'u8[8192]{0}', space=vmem, size = 0x2000, scoped, tag = 'output window, operand 0, single buffered']
    %22 = vsyncpa [#allocation3], 0
    %23 = vsyncpa [#allocation6], 0
    %24 = vsyncpa [#allocation9], 0
    %25 = vsyncpa [#allocation12], 0
    %26 = vsyncpa [#allocation4], 0
    // Predicated region
    $region2: #{tpu_custom_call.1} parent=1 // pred_check
      _
    $region3: #{tpu_custom_call.1} parent=1 // pred_check_branch
      %28 = sbr.rel (0) target = $region5
    $region4: #{tpu_custom_call.1} parent=1 // pred_region
      %s30 = ssub.s32 256, 256
      %31 = vsyncadd [#allocation3], %s30
      %s32 = sshll.u32 [#allocation2], 4
      %s33 = int_to_ptr.vmem [resolvable:$true] %s32
      %38 = dma.hbm_to_vmem [thread:$0]  %s0, 256, %s33, [#allocation3], 128, 128, 8
    $region5: #{tpu_custom_call.1} parent=1 // pred_fallthru
      _
    // Predicated region
    $region6: #{tpu_custom_call.1} parent=1 // pred_check
      _
    $region7: #{tpu_custom_call.1} parent=1 // pred_check_branch
      %40 = sbr.rel (0) target = $region9
    $region8: #{tpu_custom_call.1} parent=1 // pred_region
      _
    $region9: #{tpu_custom_call.1} parent=1 // pred_fallthru
      _
    // Predicated region
    $region10: #{tpu_custom_call.1} parent=1 // pred_check
      _
    $region11: #{tpu_custom_call.1} parent=1 // pred_check_branch
      %42 = sbr.rel (0) target = $region13
    $region12: #{tpu_custom_call.1} parent=1 // pred_region
      _
    $region13: #{tpu_custom_call.1} parent=1 // pred_fallthru
      _
    // Predicated region
    $region14: #{tpu_custom_call.1} parent=1 // pred_check
      _
    $region15: #{tpu_custom_call.1} parent=1 // pred_check_branch
      %44 = sbr.rel (0) target = $region17
    $region16: #{tpu_custom_call.1} parent=1 // pred_region
      %s46 = ssub.s32 16, 16
      %47 = vsyncadd [#allocation6], %s46
      %s49 = sshll.u32 [#allocation5], 4
      %s50 = int_to_ptr.vmem [resolvable:$true] %s49
      %52 = dma.hbm_to_vmem [thread:$0]  %s3, 16, %s50, [#allocation6]
    $region17: #{tpu_custom_call.1} parent=1 // pred_fallthru
      _
    // Predicated region
    $region18: #{tpu_custom_call.1} parent=1 // pred_check
      _
    $region19: #{tpu_custom_call.1} parent=1 // pred_check_branch
      %54 = sbr.rel (0) target = $region21
    $region20: #{tpu_custom_call.1} parent=1 // pred_region
      %s56 = ssub.s32 16, 16
      %57 = vsyncadd [#allocation6], %s56
      %s59 = sshll.u32 [#allocation7], 4
      %s60 = int_to_ptr.vmem [resolvable:$true] %s59
      %62 = dma.hbm_to_vmem [thread:$0]  %s4, 16, %s60, [#allocation6]
    $region21: #{tpu_custom_call.1} parent=1 // pred_fallthru
      _
    // Predicated region
    $region22: #{tpu_custom_call.1} parent=1 // pred_check
      _
    $region23: #{tpu_custom_call.1} parent=1 // pred_check_branch
      %64 = sbr.rel (0) target = $region25
    $region24: #{tpu_custom_call.1} parent=1 // pred_region
      %s66 = ssub.s32 256, 256
      %67 = vsyncadd [#allocation9], %s66
      %s68 = sshll.u32 [#allocation8], 4
      %s69 = int_to_ptr.vmem [resolvable:$true] %s68
      %74 = dma.hbm_to_vmem [thread:$0]  %s5, 256, %s69, [#allocation9], 64, 64, 4
    $region25: #{tpu_custom_call.1} parent=1 // pred_fallthru
      _
    // Predicated region
    $region26: #{tpu_custom_call.1} parent=1 // pred_check
      _
    $region27: #{tpu_custom_call.1} parent=1 // pred_check_branch
      %76 = sbr.rel (0) target = $region29
    $region28: #{tpu_custom_call.1} parent=1 // pred_region
      %s78 = ssub.s32 16, 16
      %79 = vsyncadd [#allocation9], %s78
      %s81 = sshll.u32 [#allocation10], 4
      %s82 = int_to_ptr.vmem [resolvable:$true] %s81
      %84 = dma.hbm_to_vmem [thread:$0]  %s6, 16, %s82, [#allocation9]
    $region29: #{tpu_custom_call.1} parent=1 // pred_fallthru
      _
    // Predicated region
    $region30: #{tpu_custom_call.1} parent=1 // pred_check
      _
    $region31: #{tpu_custom_call.1} parent=1 // pred_check_branch
      %86 = sbr.rel (0) target = $region33
    $region32: #{tpu_custom_call.1} parent=1 // pred_region
      _
    $region33: #{tpu_custom_call.1} parent=1 // pred_fallthru
      _
    // Predicated region
    $region34: #{tpu_custom_call.1} parent=1 // pred_check
      _
    $region35: #{tpu_custom_call.1} parent=1 // pred_check_branch
      %88 = sbr.rel (0) target = $region37
    $region36: #{tpu_custom_call.1} parent=1 // pred_region
      _
    $region37: #{tpu_custom_call.1} parent=1 // pred_fallthru
      _
    // Predicated region
    $region38: #{tpu_custom_call.1} parent=1 // pred_check
      _
    $region39: #{tpu_custom_call.1} parent=1 // pred_check_branch
      %90 = sbr.rel (0) target = $region41
    $region40: #{tpu_custom_call.1} parent=1 // pred_region
      %s92 = ssub.s32 512, 512
      %93 = vsyncadd [#allocation12], %s92
      %s94 = sshll.u32 [#allocation11], 4
      %s95 = int_to_ptr.vmem [resolvable:$true] %s94
      %100 = dma.hbm_to_vmem [thread:$0]  %s9, 512, %s95, [#allocation12], 64, 64, 4
    $region41: #{tpu_custom_call.1} parent=1 // pred_fallthru
      _
    // Predicated region
    $region42: #{tpu_custom_call.1} parent=1 // pred_check
      _
    $region43: #{tpu_custom_call.1} parent=1 // pred_check_branch
      %102 = sbr.rel (0) target = $region45
    $region44: #{tpu_custom_call.1} parent=1 // pred_region
      _
    $region45: #{tpu_custom_call.1} parent=1 // pred_fallthru
      _
    // Predicated region
    $region46: #{tpu_custom_call.1} parent=1 // pred_check
      _
    $region47: #{tpu_custom_call.1} parent=1 // pred_check_branch
      %104 = sbr.rel (0) target = $region49
    $region48: #{tpu_custom_call.1} parent=1 // pred_region
      %s106 = ssub.s32 512, 512
      %107 = vsyncadd [#allocation12], %s106
      %s108 = sshll.u32 [#allocation13], 4
      %s109 = int_to_ptr.vmem [resolvable:$true] %s108
      %114 = dma.hbm_to_vmem [thread:$0]  %s11, 512, %s109, [#allocation12], 64, 64, 4
    $region49: #{tpu_custom_call.1} parent=1 // pred_fallthru
      _
    // Predicated region
    $region50: #{tpu_custom_call.1} parent=1 // pred_check
      _
    $region51: #{tpu_custom_call.1} parent=1 // pred_check_branch
      %116 = sbr.rel (0) target = $region53
    $region52: #{tpu_custom_call.1} parent=1 // pred_region
      _
    $region53: #{tpu_custom_call.1} parent=1 // pred_fallthru
      _
    // Predicated region
    $region54: #{tpu_custom_call.1} parent=1 // pred_check
      _
    $region55: #{tpu_custom_call.1} parent=1 // pred_check_branch
      %118 = sbr.rel (0) target = $region57
    $region56: #{tpu_custom_call.1} parent=1 // pred_region
      _
    $region57: #{tpu_custom_call.1} parent=1 // pred_fallthru
      _
    // Predicated region
    $region58: #{tpu_custom_call.1} parent=1 // pred_check
      _
    $region59: #{tpu_custom_call.1} parent=1 // pred_check_branch
      %120 = sbr.rel (0) target = $region61
    $region60: #{tpu_custom_call.1} parent=1 // pred_region
      _
    $region61: #{tpu_custom_call.1} parent=1 // pred_fallthru
      _
    // Predicated region
    $region62: #{tpu_custom_call.1} parent=1 // pred_check
      _
    $region63: #{tpu_custom_call.1} parent=1 // pred_check_branch
      %122 = sbr.rel (0) target = $region65
    $region64: #{tpu_custom_call.1} parent=1 // pred_region
      _
    $region65: #{tpu_custom_call.1} parent=1 // pred_fallthru
      _
    // Predicated region
    $region66: #{tpu_custom_call.1} parent=1 // pred_check
      _
    $region67: #{tpu_custom_call.1} parent=1 // pred_check_branch
      %124 = sbr.rel (0) target = $region69
    $region68: #{tpu_custom_call.1} parent=1 // pred_region
      _
    $region69: #{tpu_custom_call.1} parent=1 // pred_fallthru
      _
    // Predicated region
    $region70: #{tpu_custom_call.1} parent=1 // pred_check
      _
    $region71: #{tpu_custom_call.1} parent=1 // pred_check_branch
      %126 = sbr.rel (0) target = $region73
    $region72: #{tpu_custom_call.1} parent=1 // pred_region
      %127 = dma.done [#allocation3], 256
    $region73: #{tpu_custom_call.1} parent=1 // pred_fallthru
      _
    // Predicated region
    $region74: #{tpu_custom_call.1} parent=1 // pred_check
      _
    $region75: #{tpu_custom_call.1} parent=1 // pred_check_branch
      %129 = sbr.rel (0) target = $region77
    $region76: #{tpu_custom_call.1} parent=1 // pred_region
      %130 = dma.done [#allocation6], 16
    $region77: #{tpu_custom_call.1} parent=1 // pred_fallthru
      _
    // Predicated region
    $region78: #{tpu_custom_call.1} parent=1 // pred_check
      _
    $region79: #{tpu_custom_call.1} parent=1 // pred_check_branch
      %132 = sbr.rel (0) target = $region81
    $region80: #{tpu_custom_call.1} parent=1 // pred_region
      %133 = dma.done [#allocation6], 16
    $region81: #{tpu_custom_call.1} parent=1 // pred_fallthru
      _
    // Predicated region
    $region82: #{tpu_custom_call.1} parent=1 // pred_check
      _
    $region83: #{tpu_custom_call.1} parent=1 // pred_check_branch
      %135 = sbr.rel (0) target = $region85
    $region84: #{tpu_custom_call.1} parent=1 // pred_region
      %136 = dma.done [#allocation9], 256
    $region85: #{tpu_custom_call.1} parent=1 // pred_fallthru
      _
    // Predicated region
    $region86: #{tpu_custom_call.1} parent=1 // pred_check
      _
    $region87: #{tpu_custom_call.1} parent=1 // pred_check_branch
      %138 = sbr.rel (0) target = $region89
    $region88: #{tpu_custom_call.1} parent=1 // pred_region
      %139 = dma.done [#allocation9], 16
    $region89: #{tpu_custom_call.1} parent=1 // pred_fallthru
      _
    // Predicated region
    $region90: #{tpu_custom_call.1} parent=1 // pred_check
      _
    $region91: #{tpu_custom_call.1} parent=1 // pred_check_branch
      %141 = sbr.rel (0) target = $region93
    $region92: #{tpu_custom_call.1} parent=1 // pred_region
      %142 = dma.done [#allocation12], 512
    $region93: #{tpu_custom_call.1} parent=1 // pred_fallthru
      _
    // Predicated region
    $region94: #{tpu_custom_call.1} parent=1 // pred_check
      _
    $region95: #{tpu_custom_call.1} parent=1 // pred_check_branch
      %144 = sbr.rel (0) target = $region97
    $region96: #{tpu_custom_call.1} parent=1 // pred_region
      %145 = dma.done [#allocation12], 512
    $region97: #{tpu_custom_call.1} parent=1 // pred_fallthru
      _
    %v147 = vld [vmem:[#allocation2] sm:$0xff]
    %v148 = vld [vmem:[#allocation2 + $0x8] sm:$0xff]
    %v149 = vld [vmem:[#allocation5] sm:$0x1]
    %v150 = vld [vmem:[#allocation7] sm:$0x1]
    %vm151 = vcmask 261120
    %v152 = vsel %vm151, %v147, 0.0
    %153 = vadd.xlane.f32.xlu0 %v152
    %v154 = vpop.xlane.xlu0 %153
    %v155 = vsel %vm151, %v148, 0.0
    %156 = vadd.xlane.f32.xlu0 %v155
    %v157 = vpop.xlane.xlu0 %156
    %v158 = vrcp.pop 32.0
    %v159 = vmul.f32 %v154, %v158
    %v160 = vmul.f32 %v157, %v158
    %v161 = vsub.f32 %v147, %v159
    %v162 = vsub.f32 %v148, %v160
    %v163 = vmul.f32 %v161, %v161
    %v164 = vmul.f32 %v162, %v162
    %v165 = vsel %vm151, %v163, 0.0
    %166 = vadd.xlane.f32.xlu0 %v165
    %v167 = vpop.xlane.xlu0 %166
    %v168 = vsel %vm151, %v164, 0.0
    %169 = vadd.xlane.f32.xlu0 %v168
    %v170 = vpop.xlane.xlu0 %169
    %v171 = vmul.f32 %v167, %v158
    %v172 = vmul.f32 %v170, %v158
    %v173 = vadd.f32 %v171, 1e-05
    %v174 = vadd.f32 %v172, 1e-05
    %v175 = vrsqrt.pop %v173
    %v176 = vrsqrt.pop %v174
    %v177 = vmul.f32 %v161, %v175
    %v178 = vmul.f32 %v162, %v176
    %v180 = vlaneseq
    %v181 = vshrl.u32 %v180, 7
    %v182 = vsub.s32 0, %v181
    %v183 = vrot.slane %v149, %v182
    %v185 = vmul.f32 %v177, %v183
    %v186 = vmul.f32 %v178, %v183
    %v188 = vlaneseq
    %v189 = vshrl.u32 %v188, 7
    %v190 = vsub.s32 0, %v189
    %v191 = vrot.slane %v150, %v190
    %v193 = vadd.f32 %v185, %v191
    %v194 = vadd.f32 %v186, %v191
    %v195 = vpack.c.bf16 %v194, %v193
    %v196 = vld [vmem:[#allocation8] sm:$0xf]
    %v197 = vld [vmem:[#allocation8 + $0x4] sm:$0xf]
    %v198 = vld [vmem:[#allocation8 + $0x8] sm:$0xf]
    %v199 = vld [vmem:[#allocation8 + $0xc] sm:$0xf]
    %v200 = vld [vmem:[#allocation10] sm:$0x1]
    %v202 = vlaneseq
    %v203 = vshrl.u32 %v202, 7
    %v204 = vsub.s32 0, %v203
    %v205 = vrot.slane %v200, %v204
    %v211 = vunpack.c.l.b16 %v196
    %v212 = vunpack.c.l.b16 %v197
    %v213 = vunpack.c.l.b16 %v198
    %v214 = vunpack.c.l.b16 %v199
    %v215 = vpack.c.b16 %v212, %v211
    %v216 = vpack.c.b16 %v214, %v213
    %v220 = vsel %vm151, %v195, 0
    %222 = vmatprep.subr.bf16.mxu0 0
    %223 = vmatpush1.bf16.msra.mxu0 0
    %224 = vmatprep.subr.bf16.mxu0 0
    %225 = vmatpush1.bf16.msra.mxu0 0
    %226 = vmatprep.subr.bf16.mxu0 0
    %227 = vmatpush1.bf16.msra.mxu0 0
    %228 = vmatprep.subr.bf16.mxu0 0
    %229 = vmatpush1.bf16.msra.mxu0 0
    %230 = vmatprep.subr.bf16.mxu0 0
    %231 = vmatpush1.bf16.msra.mxu0 0
    %232 = vmatprep.subr.bf16.mxu0 0
    %233 = vmatpush1.bf16.msra.mxu0 0
    %234 = vmatprep.subr.bf16.mxu0 0
    %235 = vmatpush1.bf16.msra.mxu0 %v216
    %236 = vmatprep.subr.bf16.mxu0 0
    %237 = vmatpush1.bf16.msra.mxu0 %v215
    %238 = vmatprep.subr.bf16.mxu0 0
    %239 = vmatpush2.bf16.msra.mxu0 0
    %240 = vmatprep.subr.bf16.mxu0 0
    %241 = vmatpush2.bf16.msra.mxu0 0
    %242 = vmatprep.subr.bf16.mxu0 0
    %243 = vmatpush2.bf16.msra.mxu0 0
    %244 = vmatprep.subr.bf16.mxu0 0
    %245 = vmatpush2.bf16.msra.mxu0 0
    %246 = vmatprep.subr.bf16.mxu0 0
    %247 = vmatpush2.bf16.msra.mxu0 0
    %248 = vmatprep.subr.bf16.mxu0 0
    %249 = vmatpush2.bf16.msra.mxu0 0
    %250 = vmatprep.subr.bf16.mxu0 0
    %251 = vmatpush2.bf16.msra.mxu0 0
    %252 = vmatprep.subr.bf16.mxu0 0
    %253 = vmatpush2.bf16.msra.mxu0 0
    %254 = vmatprep.mubr.bf16.mxu0 0
    %255 = vmatmul.mubr.bf16.gmra.mxu0 %v220
    %v256 = vpop.f32.mrf.mxu0
    %v257 = vadd.f32 %v205, %v256
    %v258 = vpop.f32.mrf.mxu0
    %v259 = vpop.f32.mrf.mxu0
    %v260 = vadd.f32 %v205, %v259
    %v261 = vpop.f32.mrf.mxu0
    %262 = vdwg.mxu0
    %v263 = vpack.c.bf16 %v260, %v257
    %v264 = vld [vmem:[%s7] sm:$0xf]
    %v265 = vld [vmem:[%s7 + $0x4] sm:$0xf]
    %v266 = vld [vmem:[%s7 + $0x8] sm:$0xf]
    %v267 = vld [vmem:[%s7 + $0xc] sm:$0xf]
    %v268 = vld [vmem:[%s8] sm:$0x1]
    %v270 = vlaneseq
    %v271 = vshrl.u32 %v270, 7
    %v272 = vsub.s32 0, %v271
    %v273 = vrot.slane %v268, %v272
    %v279 = vunpack.c.l.b16 %v264
    %v280 = vunpack.c.l.b16 %v265
    %v281 = vunpack.c.l.b16 %v266
    %v282 = vunpack.c.l.b16 %v267
    %v283 = vpack.c.b16 %v280, %v279
    %v284 = vpack.c.b16 %v282, %v281
    %v288 = vsel %vm151, %v263, 0
    %290 = vmatprep.subr.bf16.mxu0 0
    %291 = vmatpush1.bf16.msra.mxu0 0
    %292 = vmatprep.subr.bf16.mxu0 0
    %293 = vmatpush1.bf16.msra.mxu0 0
    %294 = vmatprep.subr.bf16.mxu0 0
    %295 = vmatpush1.bf16.msra.mxu0 0
    %296 = vmatprep.subr.bf16.mxu0 0
    %297 = vmatpush1.bf16.msra.mxu0 0
    %298 = vmatprep.subr.bf16.mxu0 0
    %299 = vmatpush1.bf16.msra.mxu0 0
    %300 = vmatprep.subr.bf16.mxu0 0
    %301 = vmatpush1.bf16.msra.mxu0 0
    %302 = vmatprep.subr.bf16.mxu0 0
    %303 = vmatpush1.bf16.msra.mxu0 %v284
    %304 = vmatprep.subr.bf16.mxu0 0
    %305 = vmatpush1.bf16.msra.mxu0 %v283
    %306 = vmatprep.subr.bf16.mxu0 0
    %307 = vmatpush2.bf16.msra.mxu0 0
    %308 = vmatprep.subr.bf16.mxu0 0
    %309 = vmatpush2.bf16.msra.mxu0 0
    %310 = vmatprep.subr.bf16.mxu0 0
    %311 = vmatpush2.bf16.msra.mxu0 0
    %312 = vmatprep.subr.bf16.mxu0 0
    %313 = vmatpush2.bf16.msra.mxu0 0
    %314 = vmatprep.subr.bf16.mxu0 0
    %315 = vmatpush2.bf16.msra.mxu0 0
    %316 = vmatprep.subr.bf16.mxu0 0
    %317 = vmatpush2.bf16.msra.mxu0 0
    %318 = vmatprep.subr.bf16.mxu0 0
    %319 = vmatpush2.bf16.msra.mxu0 0
    %320 = vmatprep.subr.bf16.mxu0 0
    %321 = vmatpush2.bf16.msra.mxu0 0
    %322 = vmatprep.mubr.bf16.mxu0 0
    %323 = vmatmul.mubr.bf16.gmra.mxu0 %v288
    %v324 = vpop.f32.mrf.mxu0
    %v325 = vadd.f32 %v273, %v324
    %v326 = vpop.f32.mrf.mxu0
    %v327 = vpop.f32.mrf.mxu0
    %v328 = vadd.f32 %v273, %v327
    %v329 = vpop.f32.mrf.mxu0
    %330 = vdwg.mxu0
    %s331 = scalar_lea.vmem %s7, 16
    %v332 = vld [vmem:[%s331] sm:$0xf]
    %v333 = vld [vmem:[%s331 + $0x4] sm:$0xf]
    %v334 = vld [vmem:[%s331 + $0x8] sm:$0xf]
    %v335 = vld [vmem:[%s331 + $0xc] sm:$0xf]
    %s336 = scalar_lea.vmem %s8, 1
    %v337 = vld [vmem:[%s336] sm:$0x1]
    %v339 = vlaneseq
    %v340 = vshrl.u32 %v339, 7
    %v341 = vsub.s32 0, %v340
    %v342 = vrot.slane %v337, %v341
    %v348 = vunpack.c.l.b16 %v332
    %v349 = vunpack.c.l.b16 %v333
    %v350 = vunpack.c.l.b16 %v334
    %v351 = vunpack.c.l.b16 %v335
    %v352 = vpack.c.b16 %v349, %v348
    %v353 = vpack.c.b16 %v351, %v350
    %356 = vmatprep.subr.bf16.mxu0 0
    %357 = vmatpush1.bf16.msra.mxu0 0
    %358 = vmatprep.subr.bf16.mxu0 0
    %359 = vmatpush1.bf16.msra.mxu0 0
    %360 = vmatprep.subr.bf16.mxu0 0
    %361 = vmatpush1.bf16.msra.mxu0 0
    %362 = vmatprep.subr.bf16.mxu0 0
    %363 = vmatpush1.bf16.msra.mxu0 0
    %364 = vmatprep.subr.bf16.mxu0 0
    %365 = vmatpush1.bf16.msra.mxu0 0
    %366 = vmatprep.subr.bf16.mxu0 0
    %367 = vmatpush1.bf16.msra.mxu0 0
    %368 = vmatprep.subr.bf16.mxu0 0
    %369 = vmatpush1.bf16.msra.mxu0 %v353
    %370 = vmatprep.subr.bf16.mxu0 0
    %371 = vmatpush1.bf16.msra.mxu0 %v352
    %372 = vmatprep.subr.bf16.mxu0 0
    %373 = vmatpush2.bf16.msra.mxu0 0
    %374 = vmatprep.subr.bf16.mxu0 0
    %375 = vmatpush2.bf16.msra.mxu0 0
    %376 = vmatprep.subr.bf16.mxu0 0
    %377 = vmatpush2.bf16.msra.mxu0 0
    %378 = vmatprep.subr.bf16.mxu0 0
    %379 = vmatpush2.bf16.msra.mxu0 0
    %380 = vmatprep.subr.bf16.mxu0 0
    %381 = vmatpush2.bf16.msra.mxu0 0
    %382 = vmatprep.subr.bf16.mxu0 0
    %383 = vmatpush2.bf16.msra.mxu0 0
    %384 = vmatprep.subr.bf16.mxu0 0
    %385 = vmatpush2.bf16.msra.mxu0 0
    %386 = vmatprep.subr.bf16.mxu0 0
    %387 = vmatpush2.bf16.msra.mxu0 0
    %388 = vmatprep.mubr.bf16.mxu0 0
    %389 = vmatmul.mubr.bf16.gmra.mxu0 %v288
    %v390 = vpop.f32.mrf.mxu0
    %v391 = vadd.f32 %v342, %v390
    %v392 = vpop.f32.mrf.mxu0
    %v393 = vpop.f32.mrf.mxu0
    %v394 = vadd.f32 %v342, %v393
    %v395 = vpop.f32.mrf.mxu0
    %396 = vdwg.mxu0
    %s397 = scalar_lea.vmem %s7, 32
    %v398 = vld [vmem:[%s397] sm:$0xf]
    %v399 = vld [vmem:[%s397 + $0x4] sm:$0xf]
    %v400 = vld [vmem:[%s397 + $0x8] sm:$0xf]
    %v401 = vld [vmem:[%s397 + $0xc] sm:$0xf]
    %s402 = scalar_lea.vmem %s8, 2
    %v403 = vld [vmem:[%s402] sm:$0x1]
    %v405 = vlaneseq
    %v406 = vshrl.u32 %v405, 7
    %v407 = vsub.s32 0, %v406
    %v408 = vrot.slane %v403, %v407
    %v414 = vunpack.c.l.b16 %v398
    %v415 = vunpack.c.l.b16 %v399
    %v416 = vunpack.c.l.b16 %v400
    %v417 = vunpack.c.l.b16 %v401
    %v418 = vpack.c.b16 %v415, %v414
    %v419 = vpack.c.b16 %v417, %v416
    %422 = vmatprep.subr.bf16.mxu0 0
    %423 = vmatpush1.bf16.msra.mxu0 0
    %424 = vmatprep.subr.bf16.mxu0 0
    %425 = vmatpush1.bf16.msra.mxu0 0
    %426 = vmatprep.subr.bf16.mxu0 0
    %427 = vmatpush1.bf16.msra.mxu0 0
    %428 = vmatprep.subr.bf16.mxu0 0
    %429 = vmatpush1.bf16.msra.mxu0 0
    %430 = vmatprep.subr.bf16.mxu0 0
    %431 = vmatpush1.bf16.msra.mxu0 0
    %432 = vmatprep.subr.bf16.mxu0 0
    %433 = vmatpush1.bf16.msra.mxu0 0
    %434 = vmatprep.subr.bf16.mxu0 0
    %435 = vmatpush1.bf16.msra.mxu0 %v419
    %436 = vmatprep.subr.bf16.mxu0 0
    %437 = vmatpush1.bf16.msra.mxu0 %v418
    %438 = vmatprep.subr.bf16.mxu0 0
    %439 = vmatpush2.bf16.msra.mxu0 0
    %440 = vmatprep.subr.bf16.mxu0 0
    %441 = vmatpush2.bf16.msra.mxu0 0
    %442 = vmatprep.subr.bf16.mxu0 0
    %443 = vmatpush2.bf16.msra.mxu0 0
    %444 = vmatprep.subr.bf16.mxu0 0
    %445 = vmatpush2.bf16.msra.mxu0 0
    %446 = vmatprep.subr.bf16.mxu0 0
    %447 = vmatpush2.bf16.msra.mxu0 0
    %448 = vmatprep.subr.bf16.mxu0 0
    %449 = vmatpush2.bf16.msra.mxu0 0
    %450 = vmatprep.subr.bf16.mxu0 0
    %451 = vmatpush2.bf16.msra.mxu0 0
    %452 = vmatprep.subr.bf16.mxu0 0
    %453 = vmatpush2.bf16.msra.mxu0 0
    %454 = vmatprep.mubr.bf16.mxu0 0
    %455 = vmatmul.mubr.bf16.gmra.mxu0 %v288
    %v456 = vpop.f32.mrf.mxu0
    %v457 = vadd.f32 %v408, %v456
    %v458 = vpop.f32.mrf.mxu0
    %v459 = vpop.f32.mrf.mxu0
    %v460 = vadd.f32 %v408, %v459
    %v461 = vpop.f32.mrf.mxu0
    %462 = vdwg.mxu0
    %v463 = vpack.c.bf16 %v391, %v391
    %v464 = vld [vmem:[%s1] sm:$0x1]
    %v465 = vld [vmem:[%s2] sm:$0x1]
    %v467 = vlaneseq
    %v468 = vshrl.u32 %v467, 7
    %v469 = vsub.s32 0, %v468
    %v470 = vrot.slane %v465, %v469
    %v472 = vmul.f32 %v325, %v470
    %v473 = vpack.c.bf16 %v472, %v472
    %v475 = vlaneseq
    %v476 = vshrl.u32 %v475, 7
    %v477 = vsub.s32 0, %v476
    %v478 = vrot.slane %v464, %v477
    %v481 = vsel %vm151, %v473, 0
    %v484 = vsel %vm151, %v463, 0
    %486 = vmatprep.subr.bf16.mxu0 0
    %487 = vmatpush1.bf16.xpose.msra.mxu0 0
    %488 = vmatprep.subr.bf16.mxu0 0
    %489 = vmatpush1.bf16.xpose.msra.mxu0 0
    %490 = vmatprep.subr.bf16.mxu0 0
    %491 = vmatpush1.bf16.xpose.msra.mxu0 0
    %492 = vmatprep.subr.bf16.mxu0 0
    %493 = vmatpush1.bf16.xpose.msra.mxu0 0
    %494 = vmatprep.subr.bf16.mxu0 0
    %495 = vmatpush1.bf16.xpose.msra.mxu0 0
    %496 = vmatprep.subr.bf16.mxu0 0
    %497 = vmatpush1.bf16.xpose.msra.mxu0 0
    %498 = vmatprep.subr.bf16.mxu0 0
    %499 = vmatpush1.bf16.xpose.msra.mxu0 0
    %500 = vmatprep.subr.bf16.mxu0 0
    %501 = vmatpush1.bf16.xpose.msra.mxu0 %v484
    %502 = vmatprep.subr.bf16.mxu0 0
    %503 = vmatpush2.bf16.xpose.msra.mxu0 0
    %504 = vmatprep.subr.bf16.mxu0 0
    %505 = vmatpush2.bf16.xpose.msra.mxu0 0
    %506 = vmatprep.subr.bf16.mxu0 0
    %507 = vmatpush2.bf16.xpose.msra.mxu0 0
    %508 = vmatprep.subr.bf16.mxu0 0
    %509 = vmatpush2.bf16.xpose.msra.mxu0 0
    %510 = vmatprep.subr.bf16.mxu0 0
    %511 = vmatpush2.bf16.xpose.msra.mxu0 0
    %512 = vmatprep.subr.bf16.mxu0 0
    %513 = vmatpush2.bf16.xpose.msra.mxu0 0
    %514 = vmatprep.subr.bf16.mxu0 0
    %515 = vmatpush2.bf16.xpose.msra.mxu0 0
    %516 = vmatprep.subr.bf16.mxu0 0
    %517 = vmatpush2.bf16.xpose.msra.mxu0 0
    %518 = vmatprep.mubr.bf16.mxu0 0
    %519 = vmatmul.mubr.bf16.gmra.mxu0 %v481
    %v520 = vpop.f32.mrf.mxu0
    %v521 = vadd.f32 %v478, %v520
    %v522 = vpop.f32.mrf.mxu0
    %v523 = vpop.f32.mrf.mxu0
    %v524 = vpop.f32.mrf.mxu0
    %525 = vdwg.mxu0
    %vm526 = vcmask 64512
    %v527 = vsel %vm526, %v521, -inf
    %528 = vmax.xlane.f32.xlu0 %v527
    %v529 = vpop.xlane.xlu0 %528
    %v530 = vsub.f32 %v521, %v529
    %v531 = vmul.f32 %v530, 1.442695
    %v532 = vpow.pop %v531
    %v533 = vsel %vm526, %v532, 0.0
    %534 = vadd.xlane.f32.xlu0 %v533
    %v535 = vpop.xlane.xlu0 %534
    %v536 = vrcp.pop %v535
    %v537 = vmul.f32 %v532, %v536
    %v538 = vpack.c.bf16 %v537, %v537
    %v539 = vmul.f32 %v457, %v470
    %v540 = vpack.c.bf16 %v539, %v539
    %s541 = scalar_lea.vmem %s2, 1
    %v542 = vld [vmem:[%s541] sm:$0x1]
    %v544 = vlaneseq
    %v545 = vshrl.u32 %v544, 7
    %v546 = vsub.s32 0, %v545
    %v547 = vrot.slane %v542, %v546
    %v549 = vmul.f32 %v325, %v547
    %v550 = vpack.c.bf16 %v549, %v549
    %v552 = vsel %vm151, %v550, 0
    %554 = vmatprep.subr.bf16.mxu0 0
    %555 = vmatpush1.bf16.xpose.msra.mxu0 0
    %556 = vmatprep.subr.bf16.mxu0 0
    %557 = vmatpush1.bf16.xpose.msra.mxu0 0
    %558 = vmatprep.subr.bf16.mxu0 0
    %559 = vmatpush1.bf16.xpose.msra.mxu0 0
    %560 = vmatprep.subr.bf16.mxu0 0
    %561 = vmatpush1.bf16.xpose.msra.mxu0 0
    %562 = vmatprep.subr.bf16.mxu0 0
    %563 = vmatpush1.bf16.xpose.msra.mxu0 0
    %564 = vmatprep.subr.bf16.mxu0 0
    %565 = vmatpush1.bf16.xpose.msra.mxu0 0
    %566 = vmatprep.subr.bf16.mxu0 0
    %567 = vmatpush1.bf16.xpose.msra.mxu0 0
    %568 = vmatprep.subr.bf16.mxu0 0
    %569 = vmatpush1.bf16.xpose.msra.mxu0 %v484
    %570 = vmatprep.subr.bf16.mxu0 0
    %571 = vmatpush2.bf16.xpose.msra.mxu0 0
    %572 = vmatprep.subr.bf16.mxu0 0
    %573 = vmatpush2.bf16.xpose.msra.mxu0 0
    %574 = vmatprep.subr.bf16.mxu0 0
    %575 = vmatpush2.bf16.xpose.msra.mxu0 0
    %576 = vmatprep.subr.bf16.mxu0 0
    %577 = vmatpush2.bf16.xpose.msra.mxu0 0
    %578 = vmatprep.subr.bf16.mxu0 0
    %579 = vmatpush2.bf16.xpose.msra.mxu0 0
    %580 = vmatprep.subr.bf16.mxu0 0
    %581 = vmatpush2.bf16.xpose.msra.mxu0 0
    %582 = vmatprep.subr.bf16.mxu0 0
    %583 = vmatpush2.bf16.xpose.msra.mxu0 0
    %584 = vmatprep.subr.bf16.mxu0 0
    %585 = vmatpush2.bf16.xpose.msra.mxu0 0
    %586 = vmatprep.mubr.bf16.mxu0 0
    %587 = vmatmul.mubr.bf16.gmra.mxu0 %v552
    %v588 = vpop.f32.mrf.mxu0
    %v589 = vadd.f32 %v478, %v588
    %v590 = vpop.f32.mrf.mxu0
    %v591 = vpop.f32.mrf.mxu0
    %v592 = vpop.f32.mrf.mxu0
    %593 = vdwg.mxu0
    %v594 = vsel %vm526, %v589, -inf
    %595 = vmax.xlane.f32.xlu0 %v594
    %v596 = vpop.xlane.xlu0 %595
    %v597 = vsub.f32 %v589, %v596
    %v598 = vmul.f32 %v597, 1.442695
    %v599 = vpow.pop %v598
    %v600 = vsel %vm526, %v599, 0.0
    %601 = vadd.xlane.f32.xlu0 %v600
    %v602 = vpop.xlane.xlu0 %601
    %v603 = vrcp.pop %v602
    %v604 = vmul.f32 %v599, %v603
    %v605 = vpack.c.bf16 %v604, %v604
    %v606 = vmul.f32 %v457, %v547
    %v607 = vpack.c.bf16 %v606, %v606
    %v609 = vsel %vm526, %v605, 0
    %vm611 = vcmask 1043456
    %v613 = vsel %vm611, %v607, 0
    %615 = vmatprep.subr.bf16.mxu0 0
    %616 = vmatpush1.bf16.msra.mxu0 0
    %617 = vmatprep.subr.bf16.mxu0 0
    %618 = vmatpush1.bf16.msra.mxu0 0
    %619 = vmatprep.subr.bf16.mxu0 0
    %620 = vmatpush1.bf16.msra.mxu0 0
    %621 = vmatprep.subr.bf16.mxu0 0
    %622 = vmatpush1.bf16.msra.mxu0 0
    %623 = vmatprep.subr.bf16.mxu0 0
    %624 = vmatpush1.bf16.msra.mxu0 0
    %625 = vmatprep.subr.bf16.mxu0 0
    %626 = vmatpush1.bf16.msra.mxu0 0
    %627 = vmatprep.subr.bf16.mxu0 0
    %628 = vmatpush1.bf16.msra.mxu0 0
    %629 = vmatprep.subr.bf16.mxu0 0
    %630 = vmatpush1.bf16.msra.mxu0 %v613
    %631 = vmatprep.subr.bf16.mxu0 0
    %632 = vmatpush2.bf16.msra.mxu0 0
    %633 = vmatprep.subr.bf16.mxu0 0
    %634 = vmatpush2.bf16.msra.mxu0 0
    %635 = vmatprep.subr.bf16.mxu0 0
    %636 = vmatpush2.bf16.msra.mxu0 0
    %637 = vmatprep.subr.bf16.mxu0 0
    %638 = vmatpush2.bf16.msra.mxu0 0
    %639 = vmatprep.subr.bf16.mxu0 0
    %640 = vmatpush2.bf16.msra.mxu0 0
    %641 = vmatprep.subr.bf16.mxu0 0
    %642 = vmatpush2.bf16.msra.mxu0 0
    %643 = vmatprep.subr.bf16.mxu0 0
    %644 = vmatpush2.bf16.msra.mxu0 0
    %645 = vmatprep.subr.bf16.mxu0 0
    %646 = vmatpush2.bf16.msra.mxu0 0
    %647 = vmatprep.mubr.bf16.mxu0 0
    %648 = vmatmul.mubr.bf16.gmra.mxu0 %v609
    %v649 = vpop.f32.mrf.mxu0
    %v650 = vadd.f32 0.0, %v649
    %v651 = vpop.f32.mrf.mxu0
    %v652 = vpop.f32.mrf.mxu0
    %v653 = vpop.f32.mrf.mxu0
    %654 = vdwg.mxu0
    %v656 = vsel %vm526, %v538, 0
    %v659 = vsel %vm611, %v540, 0
    %661 = vmatprep.subr.bf16.mxu0 0
    %662 = vmatpush1.bf16.msra.mxu0 0
    %663 = vmatprep.subr.bf16.mxu0 0
    %664 = vmatpush1.bf16.msra.mxu0 0
    %665 = vmatprep.subr.bf16.mxu0 0
    %666 = vmatpush1.bf16.msra.mxu0 0
    %667 = vmatprep.subr.bf16.mxu0 0
    %668 = vmatpush1.bf16.msra.mxu0 0
    %669 = vmatprep.subr.bf16.mxu0 0
    %670 = vmatpush1.bf16.msra.mxu0 0
    %671 = vmatprep.subr.bf16.mxu0 0
    %672 = vmatpush1.bf16.msra.mxu0 0
    %673 = vmatprep.subr.bf16.mxu0 0
    %674 = vmatpush1.bf16.msra.mxu0 0
    %675 = vmatprep.subr.bf16.mxu0 0
    %676 = vmatpush1.bf16.msra.mxu0 %v659
    %677 = vmatprep.subr.bf16.mxu0 0
    %678 = vmatpush2.bf16.msra.mxu0 0
    %679 = vmatprep.subr.bf16.mxu0 0
    %680 = vmatpush2.bf16.msra.mxu0 0
    %681 = vmatprep.subr.bf16.mxu0 0
    %682 = vmatpush2.bf16.msra.mxu0 0
    %683 = vmatprep.subr.bf16.mxu0 0
    %684 = vmatpush2.bf16.msra.mxu0 0
    %685 = vmatprep.subr.bf16.mxu0 0
    %686 = vmatpush2.bf16.msra.mxu0 0
    %687 = vmatprep.subr.bf16.mxu0 0
    %688 = vmatpush2.bf16.msra.mxu0 0
    %689 = vmatprep.subr.bf16.mxu0 0
    %690 = vmatpush2.bf16.msra.mxu0 0
    %691 = vmatprep.subr.bf16.mxu0 0
    %692 = vmatpush2.bf16.msra.mxu0 0
    %693 = vmatprep.mubr.bf16.mxu0 0
    %694 = vmatmul.mubr.bf16.gmra.mxu0 %v656
    %v695 = vpop.f32.mrf.mxu0
    %v696 = vadd.f32 %v650, %v695
    %v697 = vpop.f32.mrf.mxu0
    %v698 = vpop.f32.mrf.mxu0
    %v699 = vpop.f32.mrf.mxu0
    %700 = vdwg.mxu0
    %v701 = vpack.c.bf16 %v394, %v394
    %s702 = scalar_lea.vmem %s1, 1
    %v703 = vld [vmem:[%s702] sm:$0x1]
    %v704 = vmul.f32 %v328, %v470
    %v705 = vpack.c.bf16 %v704, %v704
    %v707 = vlaneseq
    %v708 = vshrl.u32 %v707, 7
    %v709 = vsub.s32 0, %v708
    %v710 = vrot.slane %v703, %v709
    %v713 = vsel %vm151, %v705, 0
    %v716 = vsel %vm151, %v701, 0
    %718 = vmatprep.subr.bf16.mxu0 0
    %719 = vmatpush1.bf16.xpose.msra.mxu0 0
    %720 = vmatprep.subr.bf16.mxu0 0
    %721 = vmatpush1.bf16.xpose.msra.mxu0 0
    %722 = vmatprep.subr.bf16.mxu0 0
    %723 = vmatpush1.bf16.xpose.msra.mxu0 0
    %724 = vmatprep.subr.bf16.mxu0 0
    %725 = vmatpush1.bf16.xpose.msra.mxu0 0
    %726 = vmatprep.subr.bf16.mxu0 0
    %727 = vmatpush1.bf16.xpose.msra.mxu0 0
    %728 = vmatprep.subr.bf16.mxu0 0
    %729 = vmatpush1.bf16.xpose.msra.mxu0 0
    %730 = vmatprep.subr.bf16.mxu0 0
    %731 = vmatpush1.bf16.xpose.msra.mxu0 0
    %732 = vmatprep.subr.bf16.mxu0 0
    %733 = vmatpush1.bf16.xpose.msra.mxu0 %v716
    %734 = vmatprep.subr.bf16.mxu0 0
    %735 = vmatpush2.bf16.xpose.msra.mxu0 0
    %736 = vmatprep.subr.bf16.mxu0 0
    %737 = vmatpush2.bf16.xpose.msra.mxu0 0
    %738 = vmatprep.subr.bf16.mxu0 0
    %739 = vmatpush2.bf16.xpose.msra.mxu0 0
    %740 = vmatprep.subr.bf16.mxu0 0
    %741 = vmatpush2.bf16.xpose.msra.mxu0 0
    %742 = vmatprep.subr.bf16.mxu0 0
    %743 = vmatpush2.bf16.xpose.msra.mxu0 0
    %744 = vmatprep.subr.bf16.mxu0 0
    %745 = vmatpush2.bf16.xpose.msra.mxu0 0
    %746 = vmatprep.subr.bf16.mxu0 0
    %747 = vmatpush2.bf16.xpose.msra.mxu0 0
    %748 = vmatprep.subr.bf16.mxu0 0
    %749 = vmatpush2.bf16.xpose.msra.mxu0 0
    %750 = vmatprep.mubr.bf16.mxu0 0
    %751 = vmatmul.mubr.bf16.gmra.mxu0 %v713
    %v752 = vpop.f32.mrf.mxu0
    %v753 = vadd.f32 %v710, %v752
    %v754 = vpop.f32.mrf.mxu0
    %v755 = vpop.f32.mrf.mxu0
    %v756 = vpop.f32.mrf.mxu0
    %757 = vdwg.mxu0
    %v758 = vsel %vm526, %v753, -inf
    %759 = vmax.xlane.f32.xlu0 %v758
    %v760 = vpop.xlane.xlu0 %759
    %v761 = vsub.f32 %v753, %v760
    %v762 = vmul.f32 %v761, 1.442695
    %v763 = vpow.pop %v762
    %v764 = vsel %vm526, %v763, 0.0
    %765 = vadd.xlane.f32.xlu0 %v764
    %v766 = vpop.xlane.xlu0 %765
    %v767 = vrcp.pop %v766
    %v768 = vmul.f32 %v763, %v767
    %v769 = vpack.c.bf16 %v768, %v768
    %v770 = vmul.f32 %v460, %v470
    %v771 = vpack.c.bf16 %v770, %v770
    %v772 = vmul.f32 %v328, %v547
    %v773 = vpack.c.bf16 %v772, %v772
    %v775 = vsel %vm151, %v773, 0
    %777 = vmatprep.subr.bf16.mxu0 0
    %778 = vmatpush1.bf16.xpose.msra.mxu0 0
    %779 = vmatprep.subr.bf16.mxu0 0
    %780 = vmatpush1.bf16.xpose.msra.mxu0 0
    %781 = vmatprep.subr.bf16.mxu0 0
    %782 = vmatpush1.bf16.xpose.msra.mxu0 0
    %783 = vmatprep.subr.bf16.mxu0 0
    %784 = vmatpush1.bf16.xpose.msra.mxu0 0
    %785 = vmatprep.subr.bf16.mxu0 0
    %786 = vmatpush1.bf16.xpose.msra.mxu0 0
    %787 = vmatprep.subr.bf16.mxu0 0
    %788 = vmatpush1.bf16.xpose.msra.mxu0 0
    %789 = vmatprep.subr.bf16.mxu0 0
    %790 = vmatpush1.bf16.xpose.msra.mxu0 0
    %791 = vmatprep.subr.bf16.mxu0 0
    %792 = vmatpush1.bf16.xpose.msra.mxu0 %v716
    %793 = vmatprep.subr.bf16.mxu0 0
    %794 = vmatpush2.bf16.xpose.msra.mxu0 0
    %795 = vmatprep.subr.bf16.mxu0 0
    %796 = vmatpush2.bf16.xpose.msra.mxu0 0
    %797 = vmatprep.subr.bf16.mxu0 0
    %798 = vmatpush2.bf16.xpose.msra.mxu0 0
    %799 = vmatprep.subr.bf16.mxu0 0
    %800 = vmatpush2.bf16.xpose.msra.mxu0 0
    %801 = vmatprep.subr.bf16.mxu0 0
    %802 = vmatpush2.bf16.xpose.msra.mxu0 0
    %803 = vmatprep.subr.bf16.mxu0 0
    %804 = vmatpush2.bf16.xpose.msra.mxu0 0
    %805 = vmatprep.subr.bf16.mxu0 0
    %806 = vmatpush2.bf16.xpose.msra.mxu0 0
    %807 = vmatprep.subr.bf16.mxu0 0
    %808 = vmatpush2.bf16.xpose.msra.mxu0 0
    %809 = vmatprep.mubr.bf16.mxu0 0
    %810 = vmatmul.mubr.bf16.gmra.mxu0 %v775
    %v811 = vpop.f32.mrf.mxu0
    %v812 = vadd.f32 %v710, %v811
    %v813 = vpop.f32.mrf.mxu0
    %v814 = vpop.f32.mrf.mxu0
    %v815 = vpop.f32.mrf.mxu0
    %816 = vdwg.mxu0
    %v817 = vsel %vm526, %v812, -inf
    %818 = vmax.xlane.f32.xlu0 %v817
    %v819 = vpop.xlane.xlu0 %818
    %v820 = vsub.f32 %v812, %v819
    %v821 = vmul.f32 %v820, 1.442695
    %v822 = vpow.pop %v821
    %v823 = vsel %vm526, %v822, 0.0
    %824 = vadd.xlane.f32.xlu0 %v823
    %v825 = vpop.xlane.xlu0 %824
    %v826 = vrcp.pop %v825
    %v827 = vmul.f32 %v822, %v826
    %v828 = vpack.c.bf16 %v827, %v827
    %v829 = vmul.f32 %v460, %v547
    %v830 = vpack.c.bf16 %v829, %v829
    %v832 = vsel %vm526, %v828, 0
    %v835 = vsel %vm611, %v830, 0
    %837 = vmatprep.subr.bf16.mxu0 0
    %838 = vmatpush1.bf16.msra.mxu0 0
    %839 = vmatprep.subr.bf16.mxu0 0
    %840 = vmatpush1.bf16.msra.mxu0 0
    %841 = vmatprep.subr.bf16.mxu0 0
    %842 = vmatpush1.bf16.msra.mxu0 0
    %843 = vmatprep.subr.bf16.mxu0 0
    %844 = vmatpush1.bf16.msra.mxu0 0
    %845 = vmatprep.subr.bf16.mxu0 0
    %846 = vmatpush1.bf16.msra.mxu0 0
    %847 = vmatprep.subr.bf16.mxu0 0
    %848 = vmatpush1.bf16.msra.mxu0 0
    %849 = vmatprep.subr.bf16.mxu0 0
    %850 = vmatpush1.bf16.msra.mxu0 0
    %851 = vmatprep.subr.bf16.mxu0 0
    %852 = vmatpush1.bf16.msra.mxu0 %v835
    %853 = vmatprep.subr.bf16.mxu0 0
    %854 = vmatpush2.bf16.msra.mxu0 0
    %855 = vmatprep.subr.bf16.mxu0 0
    %856 = vmatpush2.bf16.msra.mxu0 0
    %857 = vmatprep.subr.bf16.mxu0 0
    %858 = vmatpush2.bf16.msra.mxu0 0
    %859 = vmatprep.subr.bf16.mxu0 0
    %860 = vmatpush2.bf16.msra.mxu0 0
    %861 = vmatprep.subr.bf16.mxu0 0
    %862 = vmatpush2.bf16.msra.mxu0 0
    %863 = vmatprep.subr.bf16.mxu0 0
    %864 = vmatpush2.bf16.msra.mxu0 0
    %865 = vmatprep.subr.bf16.mxu0 0
    %866 = vmatpush2.bf16.msra.mxu0 0
    %867 = vmatprep.subr.bf16.mxu0 0
    %868 = vmatpush2.bf16.msra.mxu0 0
    %869 = vmatprep.mubr.bf16.mxu0 0
    %870 = vmatmul.mubr.bf16.gmra.mxu0 %v832
    %v871 = vpop.f32.mrf.mxu0
    %v872 = vadd.f32 0.0, %v871
    %v873 = vpop.f32.mrf.mxu0
    %v874 = vpop.f32.mrf.mxu0
    %v875 = vpop.f32.mrf.mxu0
    %876 = vdwg.mxu0
    %v878 = vsel %vm526, %v769, 0
    %v881 = vsel %vm611, %v771, 0
    %883 = vmatprep.subr.bf16.mxu0 0
    %884 = vmatpush1.bf16.msra.mxu0 0
    %885 = vmatprep.subr.bf16.mxu0 0
    %886 = vmatpush1.bf16.msra.mxu0 0
    %887 = vmatprep.subr.bf16.mxu0 0
    %888 = vmatpush1.bf16.msra.mxu0 0
    %889 = vmatprep.subr.bf16.mxu0 0
    %890 = vmatpush1.bf16.msra.mxu0 0
    %891 = vmatprep.subr.bf16.mxu0 0
    %892 = vmatpush1.bf16.msra.mxu0 0
    %893 = vmatprep.subr.bf16.mxu0 0
    %894 = vmatpush1.bf16.msra.mxu0 0
    %895 = vmatprep.subr.bf16.mxu0 0
    %896 = vmatpush1.bf16.msra.mxu0 0
    %897 = vmatprep.subr.bf16.mxu0 0
    %898 = vmatpush1.bf16.msra.mxu0 %v881
    %899 = vmatprep.subr.bf16.mxu0 0
    %900 = vmatpush2.bf16.msra.mxu0 0
    %901 = vmatprep.subr.bf16.mxu0 0
    %902 = vmatpush2.bf16.msra.mxu0 0
    %903 = vmatprep.subr.bf16.mxu0 0
    %904 = vmatpush2.bf16.msra.mxu0 0
    %905 = vmatprep.subr.bf16.mxu0 0
    %906 = vmatpush2.bf16.msra.mxu0 0
    %907 = vmatprep.subr.bf16.mxu0 0
    %908 = vmatpush2.bf16.msra.mxu0 0
    %909 = vmatprep.subr.bf16.mxu0 0
    %910 = vmatpush2.bf16.msra.mxu0 0
    %911 = vmatprep.subr.bf16.mxu0 0
    %912 = vmatpush2.bf16.msra.mxu0 0
    %913 = vmatprep.subr.bf16.mxu0 0
    %914 = vmatpush2.bf16.msra.mxu0 0
    %915 = vmatprep.mubr.bf16.mxu0 0
    %916 = vmatmul.mubr.bf16.gmra.mxu0 %v878
    %v917 = vpop.f32.mrf.mxu0
    %v918 = vadd.f32 %v872, %v917
    %v919 = vpop.f32.mrf.mxu0
    %v920 = vpop.f32.mrf.mxu0
    %v921 = vpop.f32.mrf.mxu0
    %922 = vdwg.mxu0
    %v923 = vpack.c.bf16 %v918, %v696
    %v924 = vld [vmem:[#allocation11] sm:$0xf]
    %v925 = vld [vmem:[#allocation11 + $0x4] sm:$0xf]
    %v926 = vld [vmem:[#allocation11 + $0x8] sm:$0xf]
    %v927 = vld [vmem:[#allocation11 + $0xc] sm:$0xf]
    %v928 = vld [vmem:[%s10] sm:$0x1]
    %v930 = vlaneseq
    %v931 = vshrl.u32 %v930, 7
    %v932 = vsub.s32 0, %v931
    %v933 = vrot.slane %v928, %v932
    %v939 = vunpack.c.l.b16 %v924
    %v940 = vunpack.c.l.b16 %v925
    %v941 = vunpack.c.l.b16 %v926
    %v942 = vunpack.c.l.b16 %v927
    %v943 = vpack.c.b16 %v940, %v939
    %v944 = vpack.c.b16 %v942, %v941
    %v948 = vsel %vm151, %v923, 0
    %950 = vmatprep.subr.bf16.mxu0 0
    %951 = vmatpush1.bf16.msra.mxu0 0
    %952 = vmatprep.subr.bf16.mxu0 0
    %953 = vmatpush1.bf16.msra.mxu0 0
    %954 = vmatprep.subr.bf16.mxu0 0
    %955 = vmatpush1.bf16.msra.mxu0 0
    %956 = vmatprep.subr.bf16.mxu0 0
    %957 = vmatpush1.bf16.msra.mxu0 0
    %958 = vmatprep.subr.bf16.mxu0 0
    %959 = vmatpush1.bf16.msra.mxu0 0
    %960 = vmatprep.subr.bf16.mxu0 0
    %961 = vmatpush1.bf16.msra.mxu0 0
    %962 = vmatprep.subr.bf16.mxu0 0
    %963 = vmatpush1.bf16.msra.mxu0 %v944
    %964 = vmatprep.subr.bf16.mxu0 0
    %965 = vmatpush1.bf16.msra.mxu0 %v943
    %966 = vmatprep.subr.bf16.mxu0 0
    %967 = vmatpush2.bf16.msra.mxu0 0
    %968 = vmatprep.subr.bf16.mxu0 0
    %969 = vmatpush2.bf16.msra.mxu0 0
    %970 = vmatprep.subr.bf16.mxu0 0
    %971 = vmatpush2.bf16.msra.mxu0 0
    %972 = vmatprep.subr.bf16.mxu0 0
    %973 = vmatpush2.bf16.msra.mxu0 0
    %974 = vmatprep.subr.bf16.mxu0 0
    %975 = vmatpush2.bf16.msra.mxu0 0
    %976 = vmatprep.subr.bf16.mxu0 0
    %977 = vmatpush2.bf16.msra.mxu0 0
    %978 = vmatprep.subr.bf16.mxu0 0
    %979 = vmatpush2.bf16.msra.mxu0 0
    %980 = vmatprep.subr.bf16.mxu0 0
    %981 = vmatpush2.bf16.msra.mxu0 0
    %982 = vmatprep.mubr.bf16.mxu0 0
    %983 = vmatmul.mubr.bf16.gmra.mxu0 %v948
    %v984 = vpop.f32.mrf.mxu0
    %v985 = vadd.f32 %v933, %v984
    %v986 = vpop.f32.mrf.mxu0
    %v987 = vpop.f32.mrf.mxu0
    %v988 = vadd.f32 %v933, %v987
    %v989 = vpop.f32.mrf.mxu0
    %990 = vdwg.mxu0
    %v991 = vpack.c.bf16 %v988, %v985
    %v992 = vld [vmem:[#allocation13] sm:$0xf]
    %v993 = vld [vmem:[#allocation13 + $0x4] sm:$0xf]
    %v994 = vld [vmem:[#allocation13 + $0x8] sm:$0xf]
    %v995 = vld [vmem:[#allocation13 + $0xc] sm:$0xf]
    %v996 = vld [vmem:[%s12] sm:$0x1]
    %v998 = vlaneseq
    %v999 = vshrl.u32 %v998, 7
    %v1000 = vsub.s32 0, %v999
    %v1001 = vrot.slane %v996, %v1000
    %v1007 = vunpack.c.l.b16 %v992
    %v1008 = vunpack.c.l.b16 %v993
    %v1009 = vunpack.c.l.b16 %v994
    %v1010 = vunpack.c.l.b16 %v995
    %v1011 = vpack.c.b16 %v1008, %v1007
    %v1012 = vpack.c.b16 %v1010, %v1009
    %v1016 = vsel %vm151, %v991, 0
    %1018 = vmatprep.subr.bf16.mxu0 0
    %1019 = vmatpush1.bf16.msra.mxu0 0
    %1020 = vmatprep.subr.bf16.mxu0 0
    %1021 = vmatpush1.bf16.msra.mxu0 0
    %1022 = vmatprep.subr.bf16.mxu0 0
    %1023 = vmatpush1.bf16.msra.mxu0 0
    %1024 = vmatprep.subr.bf16.mxu0 0
    %1025 = vmatpush1.bf16.msra.mxu0 0
    %1026 = vmatprep.subr.bf16.mxu0 0
    %1027 = vmatpush1.bf16.msra.mxu0 0
    %1028 = vmatprep.subr.bf16.mxu0 0
    %1029 = vmatpush1.bf16.msra.mxu0 0
    %1030 = vmatprep.subr.bf16.mxu0 0
    %1031 = vmatpush1.bf16.msra.mxu0 %v1012
    %1032 = vmatprep.subr.bf16.mxu0 0
    %1033 = vmatpush1.bf16.msra.mxu0 %v1011
    %1034 = vmatprep.subr.bf16.mxu0 0
    %1035 = vmatpush2.bf16.msra.mxu0 0
    %1036 = vmatprep.subr.bf16.mxu0 0
    %1037 = vmatpush2.bf16.msra.mxu0 0
    %1038 = vmatprep.subr.bf16.mxu0 0
    %1039 = vmatpush2.bf16.msra.mxu0 0
    %1040 = vmatprep.subr.bf16.mxu0 0
    %1041 = vmatpush2.bf16.msra.mxu0 0
    %1042 = vmatprep.subr.bf16.mxu0 0
    %1043 = vmatpush2.bf16.msra.mxu0 0
    %1044 = vmatprep.subr.bf16.mxu0 0
    %1045 = vmatpush2.bf16.msra.mxu0 0
    %1046 = vmatprep.subr.bf16.mxu0 0
    %1047 = vmatpush2.bf16.msra.mxu0 0
    %1048 = vmatprep.subr.bf16.mxu0 0
    %1049 = vmatpush2.bf16.msra.mxu0 0
    %1050 = vmatprep.mubr.bf16.mxu0 0
    %1051 = vmatmul.mubr.bf16.gmra.mxu0 %v1016
    %v1052 = vpop.f32.mrf.mxu0
    %v1053 = vadd.f32 %v1001, %v1052
    %v1054 = vpop.f32.mrf.mxu0
    %v1055 = vpop.f32.mrf.mxu0
    %v1056 = vadd.f32 %v1001, %v1055
    %v1057 = vpop.f32.mrf.mxu0
    %1058 = vdwg.mxu0
    %v1059 = vmul.f32 %v1053, 0.5
    %v1060 = vmul.f32 %v1056, 0.5
    %v1061 = vmul.f32 %v1053, 0.70710677
    %v1062 = vmul.f32 %v1056, 0.70710677
    %v1063 = verf.f32.pop %v1061
    %v1064 = verf.f32.pop %v1062
    %v1065 = vadd.f32 %v1063, 1.0
    %v1066 = vadd.f32 %v1064, 1.0
    %v1067 = vmul.f32 %v1059, %v1065
    %v1068 = vmul.f32 %v1060, %v1066
    %v1069 = vpack.c.bf16 %v1068, %v1067
    %v1070 = vld [vmem:[%s13] sm:$0xf]
    %v1071 = vld [vmem:[%s13 + $0x4] sm:$0xf]
    %v1072 = vld [vmem:[%s13 + $0x8] sm:$0xf]
    %v1073 = vld [vmem:[%s13 + $0xc] sm:$0xf]
    %v1074 = vld [vmem:[%s13 + $0x10] sm:$0xf]
    %v1075 = vld [vmem:[%s13 + $0x14] sm:$0xf]
    %v1076 = vld [vmem:[%s13 + $0x18] sm:$0xf]
    %v1077 = vld [vmem:[%s13 + $0x1c] sm:$0xf]
    %v1078 = vld [vmem:[%s14] sm:$0x1]
    %v1080 = vlaneseq
    %v1081 = vshrl.u32 %v1080, 7
    %v1082 = vsub.s32 0, %v1081
    %v1083 = vrot.slane %v1078, %v1082
    %v1093 = vunpack.c.l.b16 %v1070
    %v1094 = vunpack.c.l.b16 %v1071
    %v1095 = vunpack.c.l.b16 %v1072
    %v1096 = vunpack.c.l.b16 %v1073
    %v1097 = vunpack.c.l.b16 %v1074
    %v1098 = vunpack.c.l.b16 %v1075
    %v1099 = vunpack.c.l.b16 %v1076
    %v1100 = vunpack.c.l.b16 %v1077
    %v1101 = vpack.c.b16 %v1094, %v1093
    %v1102 = vpack.c.b16 %v1096, %v1095
    %v1103 = vpack.c.b16 %v1098, %v1097
    %v1104 = vpack.c.b16 %v1100, %v1099
    %vm1109 = vcmask 523264
    %v1111 = vsel %vm1109, %v1069, 0
    %1113 = vmatprep.subr.bf16.mxu0 0
    %1114 = vmatpush1.bf16.msra.mxu0 0
    %1115 = vmatprep.subr.bf16.mxu0 0
    %1116 = vmatpush1.bf16.msra.mxu0 0
    %1117 = vmatprep.subr.bf16.mxu0 0
    %1118 = vmatpush1.bf16.msra.mxu0 0
    %1119 = vmatprep.subr.bf16.mxu0 0
    %1120 = vmatpush1.bf16.msra.mxu0 0
    %1121 = vmatprep.subr.bf16.mxu0 0
    %1122 = vmatpush1.bf16.msra.mxu0 %v1104
    %1123 = vmatprep.subr.bf16.mxu0 0
    %1124 = vmatpush1.bf16.msra.mxu0 %v1103
    %1125 = vmatprep.subr.bf16.mxu0 0
    %1126 = vmatpush1.bf16.msra.mxu0 %v1102
    %1127 = vmatprep.subr.bf16.mxu0 0
    %1128 = vmatpush1.bf16.msra.mxu0 %v1101
    %1129 = vmatprep.subr.bf16.mxu0 0
    %1130 = vmatpush2.bf16.msra.mxu0 0
    %1131 = vmatprep.subr.bf16.mxu0 0
    %1132 = vmatpush2.bf16.msra.mxu0 0
    %1133 = vmatprep.subr.bf16.mxu0 0
    %1134 = vmatpush2.bf16.msra.mxu0 0
    %1135 = vmatprep.subr.bf16.mxu0 0
    %1136 = vmatpush2.bf16.msra.mxu0 0
    %1137 = vmatprep.subr.bf16.mxu0 0
    %1138 = vmatpush2.bf16.msra.mxu0 0
    %1139 = vmatprep.subr.bf16.mxu0 0
    %1140 = vmatpush2.bf16.msra.mxu0 0
    %1141 = vmatprep.subr.bf16.mxu0 0
    %1142 = vmatpush2.bf16.msra.mxu0 0
    %1143 = vmatprep.subr.bf16.mxu0 0
    %1144 = vmatpush2.bf16.msra.mxu0 0
    %1145 = vmatprep.mubr.bf16.mxu0 0
    %1146 = vmatmul.mubr.bf16.gmra.mxu0 %v1111
    %v1147 = vpop.f32.mrf.mxu0
    %v1148 = vadd.f32 %v1083, %v1147
    %v1149 = vpop.f32.mrf.mxu0
    %v1150 = vpop.f32.mrf.mxu0
    %v1151 = vadd.f32 %v1083, %v1150
    %v1152 = vpop.f32.mrf.mxu0
    %1153 = vdwg.mxu0
    %v1154 = vadd.f32 %v257, %v1148
    %v1155 = vadd.f32 %v260, %v1151
    %v1156 = vld [vmem:[%s15] sm:$0x1]
    %v1157 = vld [vmem:[%s16] sm:$0x1]
    %v1158 = vsel %vm151, %v1154, 0.0
    %1159 = vadd.xlane.f32.xlu0 %v1158
    %v1160 = vpop.xlane.xlu0 %1159
    %v1161 = vsel %vm151, %v1155, 0.0
    %1162 = vadd.xlane.f32.xlu0 %v1161
    %v1163 = vpop.xlane.xlu0 %1162
    %v1164 = vmul.f32 %v1160, %v158
    %v1165 = vmul.f32 %v1163, %v158
    %v1166 = vsub.f32 %v1154, %v1164
    %v1167 = vsub.f32 %v1155, %v1165
    %v1168 = vmul.f32 %v1166, %v1166
    %v1169 = vmul.f32 %v1167, %v1167
    %v1170 = vsel %vm151, %v1168, 0.0
    %1171 = vadd.xlane.f32.xlu0 %v1170
    %v1172 = vpop.xlane.xlu0 %1171
    %v1173 = vsel %vm151, %v1169, 0.0
    %1174 = vadd.xlane.f32.xlu0 %v1173
    %v1175 = vpop.xlane.xlu0 %1174
    %v1176 = vmul.f32 %v1172, %v158
    %v1177 = vmul.f32 %v1175, %v158
    %v1178 = vadd.f32 %v1176, 1e-05
    %v1179 = vadd.f32 %v1177, 1e-05
    %v1180 = vrsqrt.pop %v1178
    %v1181 = vrsqrt.pop %v1179
    %v1182 = vmul.f32 %v1166, %v1180
    %v1183 = vmul.f32 %v1167, %v1181
    %v1185 = vlaneseq
    %v1186 = vshrl.u32 %v1185, 7
    %v1187 = vsub.s32 0, %v1186
    %v1188 = vrot.slane %v1156, %v1187
    %v1190 = vmul.f32 %v1182, %v1188
    %v1191 = vmul.f32 %v1183, %v1188
    %v1193 = vlaneseq
    %v1194 = vshrl.u32 %v1193, 7
    %v1195 = vsub.s32 0, %v1194
    %v1196 = vrot.slane %v1157, %v1195
    %v1198 = vadd.f32 %v1190, %v1196
    %v1199 = vadd.f32 %v1191, %v1196
    %v1200 = vpack.c.bf16 %v1199, %v1198
    %s1201 = scalar_lea.vmem %s7, 48
    %v1202 = vld [vmem:[%s1201] sm:$0xf]
    %v1203 = vld [vmem:[%s1201 + $0x4] sm:$0xf]
    %v1204 = vld [vmem:[%s1201 + $0x8] sm:$0xf]
    %v1205 = vld [vmem:[%s1201 + $0xc] sm:$0xf]
    %s1206 = scalar_lea.vmem %s8, 3
    %v1207 = vld [vmem:[%s1206] sm:$0x1]
    %v1209 = vlaneseq
    %v1210 = vshrl.u32 %v1209, 7
    %v1211 = vsub.s32 0, %v1210
    %v1212 = vrot.slane %v1207, %v1211
    %v1218 = vunpack.c.l.b16 %v1202
    %v1219 = vunpack.c.l.b16 %v1203
    %v1220 = vunpack.c.l.b16 %v1204
    %v1221 = vunpack.c.l.b16 %v1205
    %v1222 = vpack.c.b16 %v1219, %v1218
    %v1223 = vpack.c.b16 %v1221, %v1220
    %v1227 = vsel %vm151, %v1200, 0
    %1229 = vmatprep.subr.bf16.mxu0 0
    %1230 = vmatpush1.bf16.msra.mxu0 0
    %1231 = vmatprep.subr.bf16.mxu0 0
    %1232 = vmatpush1.bf16.msra.mxu0 0
    %1233 = vmatprep.subr.bf16.mxu0 0
    %1234 = vmatpush1.bf16.msra.mxu0 0
    %1235 = vmatprep.subr.bf16.mxu0 0
    %1236 = vmatpush1.bf16.msra.mxu0 0
    %1237 = vmatprep.subr.bf16.mxu0 0
    %1238 = vmatpush1.bf16.msra.mxu0 0
    %1239 = vmatprep.subr.bf16.mxu0 0
    %1240 = vmatpush1.bf16.msra.mxu0 0
    %1241 = vmatprep.subr.bf16.mxu0 0
    %1242 = vmatpush1.bf16.msra.mxu0 %v1223
    %1243 = vmatprep.subr.bf16.mxu0 0
    %1244 = vmatpush1.bf16.msra.mxu0 %v1222
    %1245 = vmatprep.subr.bf16.mxu0 0
    %1246 = vmatpush2.bf16.msra.mxu0 0
    %1247 = vmatprep.subr.bf16.mxu0 0
    %1248 = vmatpush2.bf16.msra.mxu0 0
    %1249 = vmatprep.subr.bf16.mxu0 0
    %1250 = vmatpush2.bf16.msra.mxu0 0
    %1251 = vmatprep.subr.bf16.mxu0 0
    %1252 = vmatpush2.bf16.msra.mxu0 0
    %1253 = vmatprep.subr.bf16.mxu0 0
    %1254 = vmatpush2.bf16.msra.mxu0 0
    %1255 = vmatprep.subr.bf16.mxu0 0
    %1256 = vmatpush2.bf16.msra.mxu0 0
    %1257 = vmatprep.subr.bf16.mxu0 0
    %1258 = vmatpush2.bf16.msra.mxu0 0
    %1259 = vmatprep.subr.bf16.mxu0 0
    %1260 = vmatpush2.bf16.msra.mxu0 0
    %1261 = vmatprep.mubr.bf16.mxu0 0
    %1262 = vmatmul.mubr.bf16.gmra.mxu0 %v1227
    %v1263 = vpop.f32.mrf.mxu0
    %v1264 = vadd.f32 %v1212, %v1263
    %v1265 = vpop.f32.mrf.mxu0
    %v1266 = vpop.f32.mrf.mxu0
    %v1267 = vadd.f32 %v1212, %v1266
    %v1268 = vpop.f32.mrf.mxu0
    %1269 = vdwg.mxu0
    %s1270 = scalar_lea.vmem %s7, 64
    %v1271 = vld [vmem:[%s1270] sm:$0xf]
    %v1272 = vld [vmem:[%s1270 + $0x4] sm:$0xf]
    %v1273 = vld [vmem:[%s1270 + $0x8] sm:$0xf]
    %v1274 = vld [vmem:[%s1270 + $0xc] sm:$0xf]
    %s1275 = scalar_lea.vmem %s8, 4
    %v1276 = vld [vmem:[%s1275] sm:$0x1]
    %v1278 = vlaneseq
    %v1279 = vshrl.u32 %v1278, 7
    %v1280 = vsub.s32 0, %v1279
    %v1281 = vrot.slane %v1276, %v1280
    %v1287 = vunpack.c.l.b16 %v1271
    %v1288 = vunpack.c.l.b16 %v1272
    %v1289 = vunpack.c.l.b16 %v1273
    %v1290 = vunpack.c.l.b16 %v1274
    %v1291 = vpack.c.b16 %v1288, %v1287
    %v1292 = vpack.c.b16 %v1290, %v1289
    %1295 = vmatprep.subr.bf16.mxu0 0
    %1296 = vmatpush1.bf16.msra.mxu0 0
    %1297 = vmatprep.subr.bf16.mxu0 0
    %1298 = vmatpush1.bf16.msra.mxu0 0
    %1299 = vmatprep.subr.bf16.mxu0 0
    %1300 = vmatpush1.bf16.msra.mxu0 0
    %1301 = vmatprep.subr.bf16.mxu0 0
    %1302 = vmatpush1.bf16.msra.mxu0 0
    %1303 = vmatprep.subr.bf16.mxu0 0
    %1304 = vmatpush1.bf16.msra.mxu0 0
    %1305 = vmatprep.subr.bf16.mxu0 0
    %1306 = vmatpush1.bf16.msra.mxu0 0
    %1307 = vmatprep.subr.bf16.mxu0 0
    %1308 = vmatpush1.bf16.msra.mxu0 %v1292
    %1309 = vmatprep.subr.bf16.mxu0 0
    %1310 = vmatpush1.bf16.msra.mxu0 %v1291
    %1311 = vmatprep.subr.bf16.mxu0 0
    %1312 = vmatpush2.bf16.msra.mxu0 0
    %1313 = vmatprep.subr.bf16.mxu0 0
    %1314 = vmatpush2.bf16.msra.mxu0 0
    %1315 = vmatprep.subr.bf16.mxu0 0
    %1316 = vmatpush2.bf16.msra.mxu0 0
    %1317 = vmatprep.subr.bf16.mxu0 0
    %1318 = vmatpush2.bf16.msra.mxu0 0
    %1319 = vmatprep.subr.bf16.mxu0 0
    %1320 = vmatpush2.bf16.msra.mxu0 0
    %1321 = vmatprep.subr.bf16.mxu0 0
    %1322 = vmatpush2.bf16.msra.mxu0 0
    %1323 = vmatprep.subr.bf16.mxu0 0
    %1324 = vmatpush2.bf16.msra.mxu0 0
    %1325 = vmatprep.subr.bf16.mxu0 0
    %1326 = vmatpush2.bf16.msra.mxu0 0
    %1327 = vmatprep.mubr.bf16.mxu0 0
    %1328 = vmatmul.mubr.bf16.gmra.mxu0 %v1227
    %v1329 = vpop.f32.mrf.mxu0
    %v1330 = vadd.f32 %v1281, %v1329
    %v1331 = vpop.f32.mrf.mxu0
    %v1332 = vpop.f32.mrf.mxu0
    %v1333 = vadd.f32 %v1281, %v1332
    %v1334 = vpop.f32.mrf.mxu0
    %1335 = vdwg.mxu0
    %s1336 = scalar_lea.vmem %s7, 80
    %v1337 = vld [vmem:[%s1336] sm:$0xf]
    %v1338 = vld [vmem:[%s1336 + $0x4] sm:$0xf]
    %v1339 = vld [vmem:[%s1336 + $0x8] sm:$0xf]
    %v1340 = vld [vmem:[%s1336 + $0xc] sm:$0xf]
    %s1341 = scalar_lea.vmem %s8, 5
    %v1342 = vld [vmem:[%s1341] sm:$0x1]
    %v1344 = vlaneseq
    %v1345 = vshrl.u32 %v1344, 7
    %v1346 = vsub.s32 0, %v1345
    %v1347 = vrot.slane %v1342, %v1346
    %v1353 = vunpack.c.l.b16 %v1337
    %v1354 = vunpack.c.l.b16 %v1338
    %v1355 = vunpack.c.l.b16 %v1339
    %v1356 = vunpack.c.l.b16 %v1340
    %v1357 = vpack.c.b16 %v1354, %v1353
    %v1358 = vpack.c.b16 %v1356, %v1355
    %1361 = vmatprep.subr.bf16.mxu0 0
    %1362 = vmatpush1.bf16.msra.mxu0 0
    %1363 = vmatprep.subr.bf16.mxu0 0
    %1364 = vmatpush1.bf16.msra.mxu0 0
    %1365 = vmatprep.subr.bf16.mxu0 0
    %1366 = vmatpush1.bf16.msra.mxu0 0
    %1367 = vmatprep.subr.bf16.mxu0 0
    %1368 = vmatpush1.bf16.msra.mxu0 0
    %1369 = vmatprep.subr.bf16.mxu0 0
    %1370 = vmatpush1.bf16.msra.mxu0 0
    %1371 = vmatprep.subr.bf16.mxu0 0
    %1372 = vmatpush1.bf16.msra.mxu0 0
    %1373 = vmatprep.subr.bf16.mxu0 0
    %1374 = vmatpush1.bf16.msra.mxu0 %v1358
    %1375 = vmatprep.subr.bf16.mxu0 0
    %1376 = vmatpush1.bf16.msra.mxu0 %v1357
    %1377 = vmatprep.subr.bf16.mxu0 0
    %1378 = vmatpush2.bf16.msra.mxu0 0
    %1379 = vmatprep.subr.bf16.mxu0 0
    %1380 = vmatpush2.bf16.msra.mxu0 0
    %1381 = vmatprep.subr.bf16.mxu0 0
    %1382 = vmatpush2.bf16.msra.mxu0 0
    %1383 = vmatprep.subr.bf16.mxu0 0
    %1384 = vmatpush2.bf16.msra.mxu0 0
    %1385 = vmatprep.subr.bf16.mxu0 0
    %1386 = vmatpush2.bf16.msra.mxu0 0
    %1387 = vmatprep.subr.bf16.mxu0 0
    %1388 = vmatpush2.bf16.msra.mxu0 0
    %1389 = vmatprep.subr.bf16.mxu0 0
    %1390 = vmatpush2.bf16.msra.mxu0 0
    %1391 = vmatprep.subr.bf16.mxu0 0
    %1392 = vmatpush2.bf16.msra.mxu0 0
    %1393 = vmatprep.mubr.bf16.mxu0 0
    %1394 = vmatmul.mubr.bf16.gmra.mxu0 %v1227
    %v1395 = vpop.f32.mrf.mxu0
    %v1396 = vadd.f32 %v1347, %v1395
    %v1397 = vpop.f32.mrf.mxu0
    %v1398 = vpop.f32.mrf.mxu0
    %v1399 = vadd.f32 %v1347, %v1398
    %v1400 = vpop.f32.mrf.mxu0
    %1401 = vdwg.mxu0
    %v1402 = vpack.c.bf16 %v1330, %v1330
    %v1403 = vmul.f32 %v1264, %v470
    %v1404 = vpack.c.bf16 %v1403, %v1403
    %v1406 = vsel %vm151, %v1404, 0
    %v1409 = vsel %vm151, %v1402, 0
    %1411 = vmatprep.subr.bf16.mxu0 0
    %1412 = vmatpush1.bf16.xpose.msra.mxu0 0
    %1413 = vmatprep.subr.bf16.mxu0 0
    %1414 = vmatpush1.bf16.xpose.msra.mxu0 0
    %1415 = vmatprep.subr.bf16.mxu0 0
    %1416 = vmatpush1.bf16.xpose.msra.mxu0 0
    %1417 = vmatprep.subr.bf16.mxu0 0
    %1418 = vmatpush1.bf16.xpose.msra.mxu0 0
    %1419 = vmatprep.subr.bf16.mxu0 0
    %1420 = vmatpush1.bf16.xpose.msra.mxu0 0
    %1421 = vmatprep.subr.bf16.mxu0 0
    %1422 = vmatpush1.bf16.xpose.msra.mxu0 0
    %1423 = vmatprep.subr.bf16.mxu0 0
    %1424 = vmatpush1.bf16.xpose.msra.mxu0 0
    %1425 = vmatprep.subr.bf16.mxu0 0
    %1426 = vmatpush1.bf16.xpose.msra.mxu0 %v1409
    %1427 = vmatprep.subr.bf16.mxu0 0
    %1428 = vmatpush2.bf16.xpose.msra.mxu0 0
    %1429 = vmatprep.subr.bf16.mxu0 0
    %1430 = vmatpush2.bf16.xpose.msra.mxu0 0
    %1431 = vmatprep.subr.bf16.mxu0 0
    %1432 = vmatpush2.bf16.xpose.msra.mxu0 0
    %1433 = vmatprep.subr.bf16.mxu0 0
    %1434 = vmatpush2.bf16.xpose.msra.mxu0 0
    %1435 = vmatprep.subr.bf16.mxu0 0
    %1436 = vmatpush2.bf16.xpose.msra.mxu0 0
    %1437 = vmatprep.subr.bf16.mxu0 0
    %1438 = vmatpush2.bf16.xpose.msra.mxu0 0
    %1439 = vmatprep.subr.bf16.mxu0 0
    %1440 = vmatpush2.bf16.xpose.msra.mxu0 0
    %1441 = vmatprep.subr.bf16.mxu0 0
    %1442 = vmatpush2.bf16.xpose.msra.mxu0 0
    %1443 = vmatprep.mubr.bf16.mxu0 0
    %1444 = vmatmul.mubr.bf16.gmra.mxu0 %v1406
    %v1445 = vpop.f32.mrf.mxu0
    %v1446 = vadd.f32 %v478, %v1445
    %v1447 = vpop.f32.mrf.mxu0
    %v1448 = vpop.f32.mrf.mxu0
    %v1449 = vpop.f32.mrf.mxu0
    %1450 = vdwg.mxu0
    %v1451 = vsel %vm526, %v1446, -inf
    %1452 = vmax.xlane.f32.xlu0 %v1451
    %v1453 = vpop.xlane.xlu0 %1452
    %v1454 = vsub.f32 %v1446, %v1453
    %v1455 = vmul.f32 %v1454, 1.442695
    %v1456 = vpow.pop %v1455
    %v1457 = vsel %vm526, %v1456, 0.0
    %1458 = vadd.xlane.f32.xlu0 %v1457
    %v1459 = vpop.xlane.xlu0 %1458
    %v1460 = vrcp.pop %v1459
    %v1461 = vmul.f32 %v1456, %v1460
    %v1462 = vpack.c.bf16 %v1461, %v1461
    %v1463 = vmul.f32 %v1396, %v470
    %v1464 = vpack.c.bf16 %v1463, %v1463
    %v1465 = vmul.f32 %v1264, %v547
    %v1466 = vpack.c.bf16 %v1465, %v1465
    %v1468 = vsel %vm151, %v1466, 0
    %1470 = vmatprep.subr.bf16.mxu0 0
    %1471 = vmatpush1.bf16.xpose.msra.mxu0 0
    %1472 = vmatprep.subr.bf16.mxu0 0
    %1473 = vmatpush1.bf16.xpose.msra.mxu0 0
    %1474 = vmatprep.subr.bf16.mxu0 0
    %1475 = vmatpush1.bf16.xpose.msra.mxu0 0
    %1476 = vmatprep.subr.bf16.mxu0 0
    %1477 = vmatpush1.bf16.xpose.msra.mxu0 0
    %1478 = vmatprep.subr.bf16.mxu0 0
    %1479 = vmatpush1.bf16.xpose.msra.mxu0 0
    %1480 = vmatprep.subr.bf16.mxu0 0
    %1481 = vmatpush1.bf16.xpose.msra.mxu0 0
    %1482 = vmatprep.subr.bf16.mxu0 0
    %1483 = vmatpush1.bf16.xpose.msra.mxu0 0
    %1484 = vmatprep.subr.bf16.mxu0 0
    %1485 = vmatpush1.bf16.xpose.msra.mxu0 %v1409
    %1486 = vmatprep.subr.bf16.mxu0 0
    %1487 = vmatpush2.bf16.xpose.msra.mxu0 0
    %1488 = vmatprep.subr.bf16.mxu0 0
    %1489 = vmatpush2.bf16.xpose.msra.mxu0 0
    %1490 = vmatprep.subr.bf16.mxu0 0
    %1491 = vmatpush2.bf16.xpose.msra.mxu0 0
    %1492 = vmatprep.subr.bf16.mxu0 0
    %1493 = vmatpush2.bf16.xpose.msra.mxu0 0
    %1494 = vmatprep.subr.bf16.mxu0 0
    %1495 = vmatpush2.bf16.xpose.msra.mxu0 0
    %1496 = vmatprep.subr.bf16.mxu0 0
    %1497 = vmatpush2.bf16.xpose.msra.mxu0 0
    %1498 = vmatprep.subr.bf16.mxu0 0
    %1499 = vmatpush2.bf16.xpose.msra.mxu0 0
    %1500 = vmatprep.subr.bf16.mxu0 0
    %1501 = vmatpush2.bf16.xpose.msra.mxu0 0
    %1502 = vmatprep.mubr.bf16.mxu0 0
    %1503 = vmatmul.mubr.bf16.gmra.mxu0 %v1468
    %v1504 = vpop.f32.mrf.mxu0
    %v1505 = vadd.f32 %v478, %v1504
    %v1506 = vpop.f32.mrf.mxu0
    %v1507 = vpop.f32.mrf.mxu0
    %v1508 = vpop.f32.mrf.mxu0
    %1509 = vdwg.mxu0
    %v1510 = vsel %vm526, %v1505, -inf
    %1511 = vmax.xlane.f32.xlu0 %v1510
    %v1512 = vpop.xlane.xlu0 %1511
    %v1513 = vsub.f32 %v1505, %v1512
    %v1514 = vmul.f32 %v1513, 1.442695
    %v1515 = vpow.pop %v1514
    %v1516 = vsel %vm526, %v1515, 0.0
    %1517 = vadd.xlane.f32.xlu0 %v1516
    %v1518 = vpop.xlane.xlu0 %1517
    %v1519 = vrcp.pop %v1518
    %v1520 = vmul.f32 %v1515, %v1519
    %v1521 = vpack.c.bf16 %v1520, %v1520
    %v1522 = vmul.f32 %v1396, %v547
    %v1523 = vpack.c.bf16 %v1522, %v1522
    %v1525 = vsel %vm526, %v1521, 0
    %v1528 = vsel %vm611, %v1523, 0
    %1530 = vmatprep.subr.bf16.mxu0 0
    %1531 = vmatpush1.bf16.msra.mxu0 0
    %1532 = vmatprep.subr.bf16.mxu0 0
    %1533 = vmatpush1.bf16.msra.mxu0 0
    %1534 = vmatprep.subr.bf16.mxu0 0
    %1535 = vmatpush1.bf16.msra.mxu0 0
    %1536 = vmatprep.subr.bf16.mxu0 0
    %1537 = vmatpush1.bf16.msra.mxu0 0
    %1538 = vmatprep.subr.bf16.mxu0 0
    %1539 = vmatpush1.bf16.msra.mxu0 0
    %1540 = vmatprep.subr.bf16.mxu0 0
    %1541 = vmatpush1.bf16.msra.mxu0 0
    %1542 = vmatprep.subr.bf16.mxu0 0
    %1543 = vmatpush1.bf16.msra.mxu0 0
    %1544 = vmatprep.subr.bf16.mxu0 0
    %1545 = vmatpush1.bf16.msra.mxu0 %v1528
    %1546 = vmatprep.subr.bf16.mxu0 0
    %1547 = vmatpush2.bf16.msra.mxu0 0
    %1548 = vmatprep.subr.bf16.mxu0 0
    %1549 = vmatpush2.bf16.msra.mxu0 0
    %1550 = vmatprep.subr.bf16.mxu0 0
    %1551 = vmatpush2.bf16.msra.mxu0 0
    %1552 = vmatprep.subr.bf16.mxu0 0
    %1553 = vmatpush2.bf16.msra.mxu0 0
    %1554 = vmatprep.subr.bf16.mxu0 0
    %1555 = vmatpush2.bf16.msra.mxu0 0
    %1556 = vmatprep.subr.bf16.mxu0 0
    %1557 = vmatpush2.bf16.msra.mxu0 0
    %1558 = vmatprep.subr.bf16.mxu0 0
    %1559 = vmatpush2.bf16.msra.mxu0 0
    %1560 = vmatprep.subr.bf16.mxu0 0
    %1561 = vmatpush2.bf16.msra.mxu0 0
    %1562 = vmatprep.mubr.bf16.mxu0 0
    %1563 = vmatmul.mubr.bf16.gmra.mxu0 %v1525
    %v1564 = vpop.f32.mrf.mxu0
    %v1565 = vadd.f32 0.0, %v1564
    %v1566 = vpop.f32.mrf.mxu0
    %v1567 = vpop.f32.mrf.mxu0
    %v1568 = vpop.f32.mrf.mxu0
    %1569 = vdwg.mxu0
    %v1571 = vsel %vm526, %v1462, 0
    %v1574 = vsel %vm611, %v1464, 0
    %1576 = vmatprep.subr.bf16.mxu0 0
    %1577 = vmatpush1.bf16.msra.mxu0 0
    %1578 = vmatprep.subr.bf16.mxu0 0
    %1579 = vmatpush1.bf16.msra.mxu0 0
    %1580 = vmatprep.subr.bf16.mxu0 0
    %1581 = vmatpush1.bf16.msra.mxu0 0
    %1582 = vmatprep.subr.bf16.mxu0 0
    %1583 = vmatpush1.bf16.msra.mxu0 0
    %1584 = vmatprep.subr.bf16.mxu0 0
    %1585 = vmatpush1.bf16.msra.mxu0 0
    %1586 = vmatprep.subr.bf16.mxu0 0
    %1587 = vmatpush1.bf16.msra.mxu0 0
    %1588 = vmatprep.subr.bf16.mxu0 0
    %1589 = vmatpush1.bf16.msra.mxu0 0
    %1590 = vmatprep.subr.bf16.mxu0 0
    %1591 = vmatpush1.bf16.msra.mxu0 %v1574
    %1592 = vmatprep.subr.bf16.mxu0 0
    %1593 = vmatpush2.bf16.msra.mxu0 0
    %1594 = vmatprep.subr.bf16.mxu0 0
    %1595 = vmatpush2.bf16.msra.mxu0 0
    %1596 = vmatprep.subr.bf16.mxu0 0
    %1597 = vmatpush2.bf16.msra.mxu0 0
    %1598 = vmatprep.subr.bf16.mxu0 0
    %1599 = vmatpush2.bf16.msra.mxu0 0
    %1600 = vmatprep.subr.bf16.mxu0 0
    %1601 = vmatpush2.bf16.msra.mxu0 0
    %1602 = vmatprep.subr.bf16.mxu0 0
    %1603 = vmatpush2.bf16.msra.mxu0 0
    %1604 = vmatprep.subr.bf16.mxu0 0
    %1605 = vmatpush2.bf16.msra.mxu0 0
    %1606 = vmatprep.subr.bf16.mxu0 0
    %1607 = vmatpush2.bf16.msra.mxu0 0
    %1608 = vmatprep.mubr.bf16.mxu0 0
    %1609 = vmatmul.mubr.bf16.gmra.mxu0 %v1571
    %v1610 = vpop.f32.mrf.mxu0
    %v1611 = vadd.f32 %v1565, %v1610
    %v1612 = vpop.f32.mrf.mxu0
    %v1613 = vpop.f32.mrf.mxu0
    %v1614 = vpop.f32.mrf.mxu0
    %1615 = vdwg.mxu0
    %v1616 = vpack.c.bf16 %v1333, %v1333
    %v1617 = vmul.f32 %v1267, %v470
    %v1618 = vpack.c.bf16 %v1617, %v1617
    %v1620 = vsel %vm151, %v1618, 0
    %v1623 = vsel %vm151, %v1616, 0
    %1625 = vmatprep.subr.bf16.mxu0 0
    %1626 = vmatpush1.bf16.xpose.msra.mxu0 0
    %1627 = vmatprep.subr.bf16.mxu0 0
    %1628 = vmatpush1.bf16.xpose.msra.mxu0 0
    %1629 = vmatprep.subr.bf16.mxu0 0
    %1630 = vmatpush1.bf16.xpose.msra.mxu0 0
    %1631 = vmatprep.subr.bf16.mxu0 0
    %1632 = vmatpush1.bf16.xpose.msra.mxu0 0
    %1633 = vmatprep.subr.bf16.mxu0 0
    %1634 = vmatpush1.bf16.xpose.msra.mxu0 0
    %1635 = vmatprep.subr.bf16.mxu0 0
    %1636 = vmatpush1.bf16.xpose.msra.mxu0 0
    %1637 = vmatprep.subr.bf16.mxu0 0
    %1638 = vmatpush1.bf16.xpose.msra.mxu0 0
    %1639 = vmatprep.subr.bf16.mxu0 0
    %1640 = vmatpush1.bf16.xpose.msra.mxu0 %v1623
    %1641 = vmatprep.subr.bf16.mxu0 0
    %1642 = vmatpush2.bf16.xpose.msra.mxu0 0
    %1643 = vmatprep.subr.bf16.mxu0 0
    %1644 = vmatpush2.bf16.xpose.msra.mxu0 0
    %1645 = vmatprep.subr.bf16.mxu0 0
    %1646 = vmatpush2.bf16.xpose.msra.mxu0 0
    %1647 = vmatprep.subr.bf16.mxu0 0
    %1648 = vmatpush2.bf16.xpose.msra.mxu0 0
    %1649 = vmatprep.subr.bf16.mxu0 0
    %1650 = vmatpush2.bf16.xpose.msra.mxu0 0
    %1651 = vmatprep.subr.bf16.mxu0 0
    %1652 = vmatpush2.bf16.xpose.msra.mxu0 0
    %1653 = vmatprep.subr.bf16.mxu0 0
    %1654 = vmatpush2.bf16.xpose.msra.mxu0 0
    %1655 = vmatprep.subr.bf16.mxu0 0
    %1656 = vmatpush2.bf16.xpose.msra.mxu0 0
    %1657 = vmatprep.mubr.bf16.mxu0 0
    %1658 = vmatmul.mubr.bf16.gmra.mxu0 %v1620
    %v1659 = vpop.f32.mrf.mxu0
    %v1660 = vadd.f32 %v710, %v1659
    %v1661 = vpop.f32.mrf.mxu0
    %v1662 = vpop.f32.mrf.mxu0
    %v1663 = vpop.f32.mrf.mxu0
    %1664 = vdwg.mxu0
    %v1665 = vsel %vm526, %v1660, -inf
    %1666 = vmax.xlane.f32.xlu0 %v1665
    %v1667 = vpop.xlane.xlu0 %1666
    %v1668 = vsub.f32 %v1660, %v1667
    %v1669 = vmul.f32 %v1668, 1.442695
    %v1670 = vpow.pop %v1669
    %v1671 = vsel %vm526, %v1670, 0.0
    %1672 = vadd.xlane.f32.xlu0 %v1671
    %v1673 = vpop.xlane.xlu0 %1672
    %v1674 = vrcp.pop %v1673
    %v1675 = vmul.f32 %v1670, %v1674
    %v1676 = vpack.c.bf16 %v1675, %v1675
    %v1677 = vmul.f32 %v1399, %v470
    %v1678 = vpack.c.bf16 %v1677, %v1677
    %v1679 = vmul.f32 %v1267, %v547
    %v1680 = vpack.c.bf16 %v1679, %v1679
    %v1682 = vsel %vm151, %v1680, 0
    %1684 = vmatprep.subr.bf16.mxu0 0
    %1685 = vmatpush1.bf16.xpose.msra.mxu0 0
    %1686 = vmatprep.subr.bf16.mxu0 0
    %1687 = vmatpush1.bf16.xpose.msra.mxu0 0
    %1688 = vmatprep.subr.bf16.mxu0 0
    %1689 = vmatpush1.bf16.xpose.msra.mxu0 0
    %1690 = vmatprep.subr.bf16.mxu0 0
    %1691 = vmatpush1.bf16.xpose.msra.mxu0 0
    %1692 = vmatprep.subr.bf16.mxu0 0
    %1693 = vmatpush1.bf16.xpose.msra.mxu0 0
    %1694 = vmatprep.subr.bf16.mxu0 0
    %1695 = vmatpush1.bf16.xpose.msra.mxu0 0
    %1696 = vmatprep.subr.bf16.mxu0 0
    %1697 = vmatpush1.bf16.xpose.msra.mxu0 0
    %1698 = vmatprep.subr.bf16.mxu0 0
    %1699 = vmatpush1.bf16.xpose.msra.mxu0 %v1623
    %1700 = vmatprep.subr.bf16.mxu0 0
    %1701 = vmatpush2.bf16.xpose.msra.mxu0 0
    %1702 = vmatprep.subr.bf16.mxu0 0
    %1703 = vmatpush2.bf16.xpose.msra.mxu0 0
    %1704 = vmatprep.subr.bf16.mxu0 0
    %1705 = vmatpush2.bf16.xpose.msra.mxu0 0
    %1706 = vmatprep.subr.bf16.mxu0 0
    %1707 = vmatpush2.bf16.xpose.msra.mxu0 0
    %1708 = vmatprep.subr.bf16.mxu0 0
    %1709 = vmatpush2.bf16.xpose.msra.mxu0 0
    %1710 = vmatprep.subr.bf16.mxu0 0
    %1711 = vmatpush2.bf16.xpose.msra.mxu0 0
    %1712 = vmatprep.subr.bf16.mxu0 0
    %1713 = vmatpush2.bf16.xpose.msra.mxu0 0
    %1714 = vmatprep.subr.bf16.mxu0 0
    %1715 = vmatpush2.bf16.xpose.msra.mxu0 0
    %1716 = vmatprep.mubr.bf16.mxu0 0
    %1717 = vmatmul.mubr.bf16.gmra.mxu0 %v1682
    %v1718 = vpop.f32.mrf.mxu0
    %v1719 = vadd.f32 %v710, %v1718
    %v1720 = vpop.f32.mrf.mxu0
    %v1721 = vpop.f32.mrf.mxu0
    %v1722 = vpop.f32.mrf.mxu0
    %1723 = vdwg.mxu0
    %v1724 = vsel %vm526, %v1719, -inf
    %1725 = vmax.xlane.f32.xlu0 %v1724
    %v1726 = vpop.xlane.xlu0 %1725
    %v1727 = vsub.f32 %v1719, %v1726
    %v1728 = vmul.f32 %v1727, 1.442695
    %v1729 = vpow.pop %v1728
    %v1730 = vsel %vm526, %v1729, 0.0
    %1731 = vadd.xlane.f32.xlu0 %v1730
    %v1732 = vpop.xlane.xlu0 %1731
    %v1733 = vrcp.pop %v1732
    %v1734 = vmul.f32 %v1729, %v1733
    %v1735 = vpack.c.bf16 %v1734, %v1734
    %v1736 = vmul.f32 %v1399, %v547
    %v1737 = vpack.c.bf16 %v1736, %v1736
    %v1739 = vsel %vm526, %v1735, 0
    %v1742 = vsel %vm611, %v1737, 0
    %1744 = vmatprep.subr.bf16.mxu0 0
    %1745 = vmatpush1.bf16.msra.mxu0 0
    %1746 = vmatprep.subr.bf16.mxu0 0
    %1747 = vmatpush1.bf16.msra.mxu0 0
    %1748 = vmatprep.subr.bf16.mxu0 0
    %1749 = vmatpush1.bf16.msra.mxu0 0
    %1750 = vmatprep.subr.bf16.mxu0 0
    %1751 = vmatpush1.bf16.msra.mxu0 0
    %1752 = vmatprep.subr.bf16.mxu0 0
    %1753 = vmatpush1.bf16.msra.mxu0 0
    %1754 = vmatprep.subr.bf16.mxu0 0
    %1755 = vmatpush1.bf16.msra.mxu0 0
    %1756 = vmatprep.subr.bf16.mxu0 0
    %1757 = vmatpush1.bf16.msra.mxu0 0
    %1758 = vmatprep.subr.bf16.mxu0 0
    %1759 = vmatpush1.bf16.msra.mxu0 %v1742
    %1760 = vmatprep.subr.bf16.mxu0 0
    %1761 = vmatpush2.bf16.msra.mxu0 0
    %1762 = vmatprep.subr.bf16.mxu0 0
    %1763 = vmatpush2.bf16.msra.mxu0 0
    %1764 = vmatprep.subr.bf16.mxu0 0
    %1765 = vmatpush2.bf16.msra.mxu0 0
    %1766 = vmatprep.subr.bf16.mxu0 0
    %1767 = vmatpush2.bf16.msra.mxu0 0
    %1768 = vmatprep.subr.bf16.mxu0 0
    %1769 = vmatpush2.bf16.msra.mxu0 0
    %1770 = vmatprep.subr.bf16.mxu0 0
    %1771 = vmatpush2.bf16.msra.mxu0 0
    %1772 = vmatprep.subr.bf16.mxu0 0
    %1773 = vmatpush2.bf16.msra.mxu0 0
    %1774 = vmatprep.subr.bf16.mxu0 0
    %1775 = vmatpush2.bf16.msra.mxu0 0
    %1776 = vmatprep.mubr.bf16.mxu0 0
    %1777 = vmatmul.mubr.bf16.gmra.mxu0 %v1739
    %v1778 = vpop.f32.mrf.mxu0
    %v1779 = vadd.f32 0.0, %v1778
    %v1780 = vpop.f32.mrf.mxu0
    %v1781 = vpop.f32.mrf.mxu0
    %v1782 = vpop.f32.mrf.mxu0
    %1783 = vdwg.mxu0
    %v1785 = vsel %vm526, %v1676, 0
    %v1788 = vsel %vm611, %v1678, 0
    %1790 = vmatprep.subr.bf16.mxu0 0
    %1791 = vmatpush1.bf16.msra.mxu0 0
    %1792 = vmatprep.subr.bf16.mxu0 0
    %1793 = vmatpush1.bf16.msra.mxu0 0
    %1794 = vmatprep.subr.bf16.mxu0 0
    %1795 = vmatpush1.bf16.msra.mxu0 0
    %1796 = vmatprep.subr.bf16.mxu0 0
    %1797 = vmatpush1.bf16.msra.mxu0 0
    %1798 = vmatprep.subr.bf16.mxu0 0
    %1799 = vmatpush1.bf16.msra.mxu0 0
    %1800 = vmatprep.subr.bf16.mxu0 0
    %1801 = vmatpush1.bf16.msra.mxu0 0
    %1802 = vmatprep.subr.bf16.mxu0 0
    %1803 = vmatpush1.bf16.msra.mxu0 0
    %1804 = vmatprep.subr.bf16.mxu0 0
    %1805 = vmatpush1.bf16.msra.mxu0 %v1788
    %1806 = vmatprep.subr.bf16.mxu0 0
    %1807 = vmatpush2.bf16.msra.mxu0 0
    %1808 = vmatprep.subr.bf16.mxu0 0
    %1809 = vmatpush2.bf16.msra.mxu0 0
    %1810 = vmatprep.subr.bf16.mxu0 0
    %1811 = vmatpush2.bf16.msra.mxu0 0
    %1812 = vmatprep.subr.bf16.mxu0 0
    %1813 = vmatpush2.bf16.msra.mxu0 0
    %1814 = vmatprep.subr.bf16.mxu0 0
    %1815 = vmatpush2.bf16.msra.mxu0 0
    %1816 = vmatprep.subr.bf16.mxu0 0
    %1817 = vmatpush2.bf16.msra.mxu0 0
    %1818 = vmatprep.subr.bf16.mxu0 0
    %1819 = vmatpush2.bf16.msra.mxu0 0
    %1820 = vmatprep.subr.bf16.mxu0 0
    %1821 = vmatpush2.bf16.msra.mxu0 0
    %1822 = vmatprep.mubr.bf16.mxu0 0
    %1823 = vmatmul.mubr.bf16.gmra.mxu0 %v1785
    %v1824 = vpop.f32.mrf.mxu0
    %v1825 = vadd.f32 %v1779, %v1824
    %v1826 = vpop.f32.mrf.mxu0
    %v1827 = vpop.f32.mrf.mxu0
    %v1828 = vpop.f32.mrf.mxu0
    %1829 = vdwg.mxu0
    %v1830 = vpack.c.bf16 %v1825, %v1611
    %s1831 = scalar_lea.vmem [#allocation11], 16
    %v1832 = vld [vmem:[%s1831] sm:$0xf]
    %v1833 = vld [vmem:[%s1831 + $0x4] sm:$0xf]
    %v1834 = vld [vmem:[%s1831 + $0x8] sm:$0xf]
    %v1835 = vld [vmem:[%s1831 + $0xc] sm:$0xf]
    %s1836 = scalar_lea.vmem %s10, 1
    %v1837 = vld [vmem:[%s1836] sm:$0x1]
    %v1839 = vlaneseq
    %v1840 = vshrl.u32 %v1839, 7
    %v1841 = vsub.s32 0, %v1840
    %v1842 = vrot.slane %v1837, %v1841
    %v1848 = vunpack.c.l.b16 %v1832
    %v1849 = vunpack.c.l.b16 %v1833
    %v1850 = vunpack.c.l.b16 %v1834
    %v1851 = vunpack.c.l.b16 %v1835
    %v1852 = vpack.c.b16 %v1849, %v1848
    %v1853 = vpack.c.b16 %v1851, %v1850
    %v1857 = vsel %vm151, %v1830, 0
    %1859 = vmatprep.subr.bf16.mxu0 0
    %1860 = vmatpush1.bf16.msra.mxu0 0
    %1861 = vmatprep.subr.bf16.mxu0 0
    %1862 = vmatpush1.bf16.msra.mxu0 0
    %1863 = vmatprep.subr.bf16.mxu0 0
    %1864 = vmatpush1.bf16.msra.mxu0 0
    %1865 = vmatprep.subr.bf16.mxu0 0
    %1866 = vmatpush1.bf16.msra.mxu0 0
    %1867 = vmatprep.subr.bf16.mxu0 0
    %1868 = vmatpush1.bf16.msra.mxu0 0
    %1869 = vmatprep.subr.bf16.mxu0 0
    %1870 = vmatpush1.bf16.msra.mxu0 0
    %1871 = vmatprep.subr.bf16.mxu0 0
    %1872 = vmatpush1.bf16.msra.mxu0 %v1853
    %1873 = vmatprep.subr.bf16.mxu0 0
    %1874 = vmatpush1.bf16.msra.mxu0 %v1852
    %1875 = vmatprep.subr.bf16.mxu0 0
    %1876 = vmatpush2.bf16.msra.mxu0 0
    %1877 = vmatprep.subr.bf16.mxu0 0
    %1878 = vmatpush2.bf16.msra.mxu0 0
    %1879 = vmatprep.subr.bf16.mxu0 0
    %1880 = vmatpush2.bf16.msra.mxu0 0
    %1881 = vmatprep.subr.bf16.mxu0 0
    %1882 = vmatpush2.bf16.msra.mxu0 0
    %1883 = vmatprep.subr.bf16.mxu0 0
    %1884 = vmatpush2.bf16.msra.mxu0 0
    %1885 = vmatprep.subr.bf16.mxu0 0
    %1886 = vmatpush2.bf16.msra.mxu0 0
    %1887 = vmatprep.subr.bf16.mxu0 0
    %1888 = vmatpush2.bf16.msra.mxu0 0
    %1889 = vmatprep.subr.bf16.mxu0 0
    %1890 = vmatpush2.bf16.msra.mxu0 0
    %1891 = vmatprep.mubr.bf16.mxu0 0
    %1892 = vmatmul.mubr.bf16.gmra.mxu0 %v1857
    %v1893 = vpop.f32.mrf.mxu0
    %v1894 = vadd.f32 %v1842, %v1893
    %v1895 = vpop.f32.mrf.mxu0
    %v1896 = vpop.f32.mrf.mxu0
    %v1897 = vadd.f32 %v1842, %v1896
    %v1898 = vpop.f32.mrf.mxu0
    %1899 = vdwg.mxu0
    %v1900 = vpack.c.bf16 %v1897, %v1894
    %s1901 = scalar_lea.vmem [#allocation13], 16
    %v1902 = vld [vmem:[%s1901] sm:$0xf]
    %v1903 = vld [vmem:[%s1901 + $0x4] sm:$0xf]
    %v1904 = vld [vmem:[%s1901 + $0x8] sm:$0xf]
    %v1905 = vld [vmem:[%s1901 + $0xc] sm:$0xf]
    %s1906 = scalar_lea.vmem %s12, 1
    %v1907 = vld [vmem:[%s1906] sm:$0x1]
    %v1909 = vlaneseq
    %v1910 = vshrl.u32 %v1909, 7
    %v1911 = vsub.s32 0, %v1910
    %v1912 = vrot.slane %v1907, %v1911
    %v1918 = vunpack.c.l.b16 %v1902
    %v1919 = vunpack.c.l.b16 %v1903
    %v1920 = vunpack.c.l.b16 %v1904
    %v1921 = vunpack.c.l.b16 %v1905
    %v1922 = vpack.c.b16 %v1919, %v1918
    %v1923 = vpack.c.b16 %v1921, %v1920
    %v1927 = vsel %vm151, %v1900, 0
    %1929 = vmatprep.subr.bf16.mxu0 0
    %1930 = vmatpush1.bf16.msra.mxu0 0
    %1931 = vmatprep.subr.bf16.mxu0 0
    %1932 = vmatpush1.bf16.msra.mxu0 0
    %1933 = vmatprep.subr.bf16.mxu0 0
    %1934 = vmatpush1.bf16.msra.mxu0 0
    %1935 = vmatprep.subr.bf16.mxu0 0
    %1936 = vmatpush1.bf16.msra.mxu0 0
    %1937 = vmatprep.subr.bf16.mxu0 0
    %1938 = vmatpush1.bf16.msra.mxu0 0
    %1939 = vmatprep.subr.bf16.mxu0 0
    %1940 = vmatpush1.bf16.msra.mxu0 0
    %1941 = vmatprep.subr.bf16.mxu0 0
    %1942 = vmatpush1.bf16.msra.mxu0 %v1923
    %1943 = vmatprep.subr.bf16.mxu0 0
    %1944 = vmatpush1.bf16.msra.mxu0 %v1922
    %1945 = vmatprep.subr.bf16.mxu0 0
    %1946 = vmatpush2.bf16.msra.mxu0 0
    %1947 = vmatprep.subr.bf16.mxu0 0
    %1948 = vmatpush2.bf16.msra.mxu0 0
    %1949 = vmatprep.subr.bf16.mxu0 0
    %1950 = vmatpush2.bf16.msra.mxu0 0
    %1951 = vmatprep.subr.bf16.mxu0 0
    %1952 = vmatpush2.bf16.msra.mxu0 0
    %1953 = vmatprep.subr.bf16.mxu0 0
    %1954 = vmatpush2.bf16.msra.mxu0 0
    %1955 = vmatprep.subr.bf16.mxu0 0
    %1956 = vmatpush2.bf16.msra.mxu0 0
    %1957 = vmatprep.subr.bf16.mxu0 0
    %1958 = vmatpush2.bf16.msra.mxu0 0
    %1959 = vmatprep.subr.bf16.mxu0 0
    %1960 = vmatpush2.bf16.msra.mxu0 0
    %1961 = vmatprep.mubr.bf16.mxu0 0
    %1962 = vmatmul.mubr.bf16.gmra.mxu0 %v1927
    %v1963 = vpop.f32.mrf.mxu0
    %v1964 = vadd.f32 %v1912, %v1963
    %v1965 = vpop.f32.mrf.mxu0
    %v1966 = vpop.f32.mrf.mxu0
    %v1967 = vadd.f32 %v1912, %v1966
    %v1968 = vpop.f32.mrf.mxu0
    %1969 = vdwg.mxu0
    %v1970 = vmul.f32 %v1964, 0.5
    %v1971 = vmul.f32 %v1967, 0.5
    %v1972 = vmul.f32 %v1964, 0.70710677
    %v1973 = vmul.f32 %v1967, 0.70710677
    %v1974 = verf.f32.pop %v1972
    %v1975 = verf.f32.pop %v1973
    %v1976 = vadd.f32 %v1974, 1.0
    %v1977 = vadd.f32 %v1975, 1.0
    %v1978 = vmul.f32 %v1970, %v1976
    %v1979 = vmul.f32 %v1971, %v1977
    %v1980 = vpack.c.bf16 %v1979, %v1978
    %s1981 = scalar_lea.vmem %s13, 32
    %v1982 = vld [vmem:[%s1981] sm:$0xf]
    %v1983 = vld [vmem:[%s1981 + $0x4] sm:$0xf]
    %v1984 = vld [vmem:[%s1981 + $0x8] sm:$0xf]
    %v1985 = vld [vmem:[%s1981 + $0xc] sm:$0xf]
    %v1986 = vld [vmem:[%s1981 + $0x10] sm:$0xf]
    %v1987 = vld [vmem:[%s1981 + $0x14] sm:$0xf]
    %v1988 = vld [vmem:[%s1981 + $0x18] sm:$0xf]
    %v1989 = vld [vmem:[%s1981 + $0x1c] sm:$0xf]
    %s1990 = scalar_lea.vmem %s14, 1
    %v1991 = vld [vmem:[%s1990] sm:$0x1]
    %v1993 = vlaneseq
    %v1994 = vshrl.u32 %v1993, 7
    %v1995 = vsub.s32 0, %v1994
    %v1996 = vrot.slane %v1991, %v1995
    %v2006 = vunpack.c.l.b16 %v1982
    %v2007 = vunpack.c.l.b16 %v1983
    %v2008 = vunpack.c.l.b16 %v1984
    %v2009 = vunpack.c.l.b16 %v1985
    %v2010 = vunpack.c.l.b16 %v1986
    %v2011 = vunpack.c.l.b16 %v1987
    %v2012 = vunpack.c.l.b16 %v1988
    %v2013 = vunpack.c.l.b16 %v1989
    %v2014 = vpack.c.b16 %v2007, %v2006
    %v2015 = vpack.c.b16 %v2009, %v2008
    %v2016 = vpack.c.b16 %v2011, %v2010
    %v2017 = vpack.c.b16 %v2013, %v2012
    %v2023 = vsel %vm1109, %v1980, 0
    %2025 = vmatprep.subr.bf16.mxu0 0
    %2026 = vmatpush1.bf16.msra.mxu0 0
    %2027 = vmatprep.subr.bf16.mxu0 0
    %2028 = vmatpush1.bf16.msra.mxu0 0
    %2029 = vmatprep.subr.bf16.mxu0 0
    %2030 = vmatpush1.bf16.msra.mxu0 0
    %2031 = vmatprep.subr.bf16.mxu0 0
    %2032 = vmatpush1.bf16.msra.mxu0 0
    %2033 = vmatprep.subr.bf16.mxu0 0
    %2034 = vmatpush1.bf16.msra.mxu0 %v2017
    %2035 = vmatprep.subr.bf16.mxu0 0
    %2036 = vmatpush1.bf16.msra.mxu0 %v2016
    %2037 = vmatprep.subr.bf16.mxu0 0
    %2038 = vmatpush1.bf16.msra.mxu0 %v2015
    %2039 = vmatprep.subr.bf16.mxu0 0
    %2040 = vmatpush1.bf16.msra.mxu0 %v2014
    %2041 = vmatprep.subr.bf16.mxu0 0
    %2042 = vmatpush2.bf16.msra.mxu0 0
    %2043 = vmatprep.subr.bf16.mxu0 0
    %2044 = vmatpush2.bf16.msra.mxu0 0
    %2045 = vmatprep.subr.bf16.mxu0 0
    %2046 = vmatpush2.bf16.msra.mxu0 0
    %2047 = vmatprep.subr.bf16.mxu0 0
    %2048 = vmatpush2.bf16.msra.mxu0 0
    %2049 = vmatprep.subr.bf16.mxu0 0
    %2050 = vmatpush2.bf16.msra.mxu0 0
    %2051 = vmatprep.subr.bf16.mxu0 0
    %2052 = vmatpush2.bf16.msra.mxu0 0
    %2053 = vmatprep.subr.bf16.mxu0 0
    %2054 = vmatpush2.bf16.msra.mxu0 0
    %2055 = vmatprep.subr.bf16.mxu0 0
    %2056 = vmatpush2.bf16.msra.mxu0 0
    %2057 = vmatprep.mubr.bf16.mxu0 0
    %2058 = vmatmul.mubr.bf16.gmra.mxu0 %v2023
    %v2059 = vpop.f32.mrf.mxu0
    %v2060 = vadd.f32 %v1996, %v2059
    %v2061 = vpop.f32.mrf.mxu0
    %v2062 = vpop.f32.mrf.mxu0
    %v2063 = vadd.f32 %v1996, %v2062
    %v2064 = vpop.f32.mrf.mxu0
    %2065 = vdwg.mxu0
    %v2066 = vadd.f32 %v1198, %v2060
    %v2067 = vadd.f32 %v1199, %v2063
    %s2068 = scalar_lea.vmem %s15, 1
    %v2069 = vld [vmem:[%s2068] sm:$0x1]
    %s2070 = scalar_lea.vmem %s16, 1
    %v2071 = vld [vmem:[%s2070] sm:$0x1]
    %v2072 = vsel %vm151, %v2066, 0.0
    %2073 = vadd.xlane.f32.xlu0 %v2072
    %v2074 = vpop.xlane.xlu0 %2073
    %v2075 = vsel %vm151, %v2067, 0.0
    %2076 = vadd.xlane.f32.xlu0 %v2075
    %v2077 = vpop.xlane.xlu0 %2076
    %v2078 = vmul.f32 %v2074, %v158
    %v2079 = vmul.f32 %v2077, %v158
    %v2080 = vsub.f32 %v2066, %v2078
    %v2081 = vsub.f32 %v2067, %v2079
    %v2082 = vmul.f32 %v2080, %v2080
    %v2083 = vmul.f32 %v2081, %v2081
    %v2084 = vsel %vm151, %v2082, 0.0
    %2085 = vadd.xlane.f32.xlu0 %v2084
    %v2086 = vpop.xlane.xlu0 %2085
    %v2087 = vsel %vm151, %v2083, 0.0
    %2088 = vadd.xlane.f32.xlu0 %v2087
    %v2089 = vpop.xlane.xlu0 %2088
    %v2090 = vmul.f32 %v2086, %v158
    %v2091 = vmul.f32 %v2089, %v158
    %v2092 = vadd.f32 %v2090, 1e-05
    %v2093 = vadd.f32 %v2091, 1e-05
    %v2094 = vrsqrt.pop %v2092
    %v2095 = vrsqrt.pop %v2093
    %v2096 = vmul.f32 %v2080, %v2094
    %v2097 = vmul.f32 %v2081, %v2095
    %v2099 = vlaneseq
    %v2100 = vshrl.u32 %v2099, 7
    %v2101 = vsub.s32 0, %v2100
    %v2102 = vrot.slane %v2069, %v2101
    %v2104 = vmul.f32 %v2096, %v2102
    %v2105 = vmul.f32 %v2097, %v2102
    %v2107 = vlaneseq
    %v2108 = vshrl.u32 %v2107, 7
    %v2109 = vsub.s32 0, %v2108
    %v2110 = vrot.slane %v2071, %v2109
    %v2112 = vadd.f32 %v2104, %v2110
    %v2113 = vadd.f32 %v2105, %v2110
    %2114 = vst.msk [vmem:[#allocation14] sm:$0xff] %vm151, %v2112
    %2115 = vst.msk [vmem:[#allocation14 + $0x8] sm:$0xff] %vm151, %v2113
    // Predicated region
    $region98: #{tpu_custom_call.1} parent=1 // pred_check
      _
    $region99: #{tpu_custom_call.1} parent=1 // pred_check_branch
      %2117 = sbr.rel (0) target = $region101
    $region100: #{tpu_custom_call.1} parent=1 // pred_region
      %s2119 = ssub.s32 256, 256
      %2120 = vsyncadd [#allocation4], %s2119
      %s2121 = sshll.u32 [#allocation14], 4
      %s2122 = int_to_ptr.vmem [resolvable:$true] %s2121
      %2127 = dma.vmem_to_hbm [thread:$0]  %s2122, 256, %s17, [#allocation4], 128, 128, 8
    $region101: #{tpu_custom_call.1} parent=1 // pred_fallthru
      _
    // Predicated region
    $region102: #{tpu_custom_call.1} parent=1 // pred_check
      _
    $region103: #{tpu_custom_call.1} parent=1 // pred_check_branch
      %2129 = sbr.rel (0) target = $region105
    $region104: #{tpu_custom_call.1} parent=1 // pred_region
      %2130 = dma.done [#allocation4], 256
    $region105: #{tpu_custom_call.1} parent=1 // pred_fallthru
      _
    %2131 = vsyncpa [#allocation3], 1
    %2132 = vsyncpa [#allocation6], 1
    %2133 = vsyncpa [#allocation9], 1
    %2134 = vsyncpa [#allocation12], 1
    %2135 = vsyncpa [#allocation4], 1

</llo_original>
